<compile_context>
chip_gen: v6e
topology: v6e:2x2x1
jax: 0.10.0
libtpu: 0.0.40
codegen_flags: <defaults>
</compile_context>

<pallas_src>
import functools
import math

import jax
import jax.numpy as jnp
from jax.experimental import pallas as pl
from jax.experimental.pallas import tpu as pltpu

EPS = 1e-5
_GELU_C = math.sqrt(2.0 / math.pi)
VMEM_LIMIT = 32 * 1024 * 1024  # explicit scoped-VMEM ceiling (safe on v5e/v6e/v7x)

_RESIDENT = pl.BlockSpec(memory_space=pltpu.MemorySpace.VMEM)  # whole array in VMEM


def _gelu_tanh(x):
    return 0.5 * x * (1.0 + jnp.tanh(_GELU_C * (x + 0.044715 * x * x * x)))


# ---------------------------------------------------------------------------
# Patch embedding kernel: out = patches @ W + b + pos   (per batch element)
# ---------------------------------------------------------------------------
def _patch_embed_kernel(p_ref, w_ref, b_ref, pos_ref, o_ref):
    acc = jnp.dot(p_ref[0], w_ref[...], preferred_element_type=jnp.float32)
    acc = acc + b_ref[...].astype(jnp.float32) + pos_ref[...].astype(jnp.float32)
    o_ref[0] = acc.astype(o_ref.dtype)


def patch_embed(patches, w, b2d, pos):
    """patches: (B, P, K) bf16; w: (K, H) bf16; b2d: (1, H) f32; pos: (P, H) f32."""
    B, P, K = patches.shape
    H = w.shape[1]
    return pl.pallas_call(
        _patch_embed_kernel,
        out_shape=jax.ShapeDtypeStruct((B, P, H), jnp.bfloat16),
        grid_spec=pltpu.PrefetchScalarGridSpec(
            num_scalar_prefetch=0,
            grid=(B,),
            in_specs=[pl.BlockSpec((1, P, K), lambda i: (i, 0, 0)),
                      _RESIDENT, _RESIDENT, _RESIDENT],
            out_specs=pl.BlockSpec((1, P, H), lambda i: (i, 0, 0)),
        ),
        compiler_params=pltpu.CompilerParams(
            dimension_semantics=("parallel",),
            vmem_limit_bytes=VMEM_LIMIT),
    )(patches, w, b2d, pos)


# ---------------------------------------------------------------------------
# Fused ViT encoder block kernel (one batch element per grid step)
#   LN1 -> QKV (fused) -> attention -> Wo + residual -> LN2 -> MLP + residual
# ---------------------------------------------------------------------------
def _vit_block_kernel(x_ref, ln1g_ref, ln1b_ref, wqkv_ref, wo_ref,
                      ln2g_ref, ln2b_ref, w1_ref, b1_ref, w2_ref, b2_ref,
                      o_ref, *, num_heads, scale):
    f32 = jnp.float32
    bf16 = jnp.bfloat16

    x = x_ref[0].astype(f32)                      # (S, H)
    H = x.shape[-1]
    d = H // num_heads

    def layer_norm(z, g_ref, b_ref):
        mu = jnp.mean(z, axis=-1, keepdims=True)
        c = z - mu
        var = jnp.mean(c * c, axis=-1, keepdims=True)
        return (c * jax.lax.rsqrt(var + EPS) * g_ref[...].astype(f32)
                + b_ref[...].astype(f32))

    def mm(a_f32, w_bf16):                        # bf16 MXU, f32 accumulation
        return jnp.dot(a_f32.astype(bf16), w_bf16, preferred_element_type=f32)

    # ---- attention sub-layer (LN1 prologue, QKV fused, residual epilogue) ----
    x_ln1 = layer_norm(x, ln1g_ref, ln1b_ref)
    qkv = mm(x_ln1, wqkv_ref[...])                # (S, 3H), f32

    attn_proj = None
    for h in range(num_heads):                    # static unrolled head loop
        q = qkv[:, h * d:(h + 1) * d]
        k = qkv[:, H + h * d:H + (h + 1) * d]
        v = qkv[:, 2 * H + h * d:2 * H + (h + 1) * d]
        s = jax.lax.dot_general(q.astype(bf16), k.astype(bf16),
                                (((1,), (1,)), ((), ())),
                                preferred_element_type=f32) * scale
        m = jnp.max(s, axis=-1, keepdims=True)
        p = jnp.exp(s - m)
        p = p * pl.reciprocal(jnp.sum(p, axis=-1, keepdims=True), approx=True)
        o_h = jnp.dot(p.astype(bf16), v.astype(bf16), preferred_element_type=f32)
        # concat(o_heads) @ Wo  ==  sum_h  o_h @ Wo[h*d:(h+1)*d, :]
        part = jnp.dot(o_h.astype(bf16), wo_ref[h * d:(h + 1) * d, :],
                       preferred_element_type=f32)
        attn_proj = part if attn_proj is None else attn_proj + part
    x = x + attn_proj                             # residual (f32)

    # ---- MLP sub-layer (LN2 prologue, GELU + bias + residual epilogue) ----
    x_ln2 = layer_norm(x, ln2g_ref, ln2b_ref)
    h1 = _gelu_tanh(mm(x_ln2, w1_ref[...]) + b1_ref[...].astype(f32))
    x = x + mm(h1, w2_ref[...]) + b2_ref[...].astype(f32)

    o_ref[0] = x.astype(o_ref.dtype)


def vit_block(X, p, num_heads):
    """X: (B, S, H) bf16. All block weights VMEM-resident; grid over batch."""
    B, S, H = X.shape
    scale = 1.0 / math.sqrt(H // num_heads)
    kernel = functools.partial(_vit_block_kernel, num_heads=num_heads, scale=scale)
    return pl.pallas_call(
        kernel,
        out_shape=jax.ShapeDtypeStruct((B, S, H), X.dtype),
        grid_spec=pltpu.PrefetchScalarGridSpec(
            num_scalar_prefetch=0,
            grid=(B,),
            in_specs=[pl.BlockSpec((1, S, H), lambda i: (i, 0, 0))] + [_RESIDENT] * 10,
            out_specs=pl.BlockSpec((1, S, H), lambda i: (i, 0, 0)),
        ),
        compiler_params=pltpu.CompilerParams(
            dimension_semantics=("parallel",),
            vmem_limit_bytes=VMEM_LIMIT),
    )(X, p["ln1_g"], p["ln1_b"], p["Wqkv"], p["Wo"],
      p["ln2_g"], p["ln2_b"], p["mlp_w1"], p["mlp_b1"], p["mlp_w2"], p["mlp_b2"])


# ---------------------------------------------------------------------------
# Classification head kernel: LayerNorm + Linear fused
# ---------------------------------------------------------------------------
def _head_kernel(x_ref, g_ref, b_ref, w_ref, hb_ref, o_ref):
    f32 = jnp.float32
    x = x_ref[...].astype(f32)
    mu = jnp.mean(x, axis=-1, keepdims=True)
    c = x - mu
    var = jnp.mean(c * c, axis=-1, keepdims=True)
    xn = (c * jax.lax.rsqrt(var + EPS) * g_ref[...].astype(f32)
          + b_ref[...].astype(f32))
    out = jnp.dot(xn.astype(jnp.bfloat16), w_ref[...], preferred_element_type=f32)
    o_ref[...] = (out + hb_ref[...].astype(f32)).astype(o_ref.dtype)


def vit_head(cls_tok, ln_g, ln_b, w, b2d):
    B, H = cls_tok.shape
    C = w.shape[1]
    return pl.pallas_call(
        _head_kernel,
        out_shape=jax.ShapeDtypeStruct((B, C), jnp.float32),
        grid_spec=pltpu.PrefetchScalarGridSpec(
            num_scalar_prefetch=0,
            grid=(1,),
            in_specs=[pl.BlockSpec((B, H), lambda i: (0, 0)),
                      _RESIDENT, _RESIDENT, _RESIDENT, _RESIDENT],
            out_specs=pl.BlockSpec((B, C), lambda i: (0, 0)),
        ),
        compiler_params=pltpu.CompilerParams(
            dimension_semantics=("arbitrary",),
            vmem_limit_bytes=VMEM_LIMIT),
    )(cls_tok, ln_g, ln_b, w, b2d)


# ---------------------------------------------------------------------------
# Full forward pass (kernel path)
# ---------------------------------------------------------------------------
def vit_forward(X_img, kp, *, patch_size, num_heads):
    B, C, Himg, Wimg = X_img.shape
    ph = pw = patch_size
    Hp, Wp = Himg // ph, Wimg // pw
    num_patches = Hp * Wp
    H = kp["patch_w"].shape[1]

    # Patch extraction (stride==kernel conv == per-patch matmul) — layout
    # plumbing in JAX, compute in the Pallas kernel. Activations stored bf16.
    patches = (X_img.reshape(B, C, Hp, ph, Wp, pw)
                    .transpose(0, 2, 4, 1, 3, 5)
                    .reshape(B, num_patches, C * ph * pw)).astype(jnp.bfloat16)

    emb = patch_embed(patches, kp["patch_w"], kp["patch_b"], kp["pos_patch"])

    # cls token row (cls_token + its positional embedding), precomputed in f32,
    # stored bf16.  emb_dropout: identity in eval mode.
    X = jnp.concatenate(
        [jnp.broadcast_to(kp["cls_pos"], (B, 1, H)), emb], axis=1)  # (B, S, H) bf16

    for blk in kp["blocks"]:
        X = vit_block(X, blk, num_heads)

    cls_tok = X[:, 0]                                               # (B, H) bf16
    return vit_head(cls_tok, kp["head_ln_g"], kp["head_ln_b"],
                    kp["head_w"], kp["head_b"])                     # (B, classes) f32


# ---------------------------------------------------------------------------
# Parameters (f32 master copy), kernel-side preparation (bf16 + QKV concat),
# and a pure-JAX reference with the same numerics for validation.
# ---------------------------------------------------------------------------
def init_params(key, *, in_channels, patch_size, num_hiddens, mlp_num_hiddens,
                num_blks, num_patches, num_classes):
    H = num_hiddens
    keys = iter(jax.random.split(key, 16 + 16 * num_blks))

    def dense(fan_in, fan_out):
        return (jax.random.normal(next(keys), (fan_in, fan_out), jnp.float32)
                / math.sqrt(fan_in))

    def vec(n, scale=0.1):
        return scale * jax.random.normal(next(keys), (n,), jnp.float32)

    patch_dim = in_channels * patch_size * patch_size
    params = {
        "patch_w": dense(patch_dim, H),
        "patch_b": vec(H),
        "cls_token": 0.02 * jax.random.normal(next(keys), (1, 1, H), jnp.float32),
        "pos_embedding": 0.02 * jax.random.normal(next(keys),
                                                  (1, num_patches + 1, H), jnp.float32),
        "head_ln_g": 1.0 + vec(H),
        "head_ln_b": vec(H),
        "head_w": dense(H, num_classes),
        "head_b": vec(num_classes),
        "blocks": [],
    }
    for _ in range(num_blks):
        params["blocks"].append({
            "ln1_g": 1.0 + vec(H), "ln1_b": vec(H),
            "ln2_g": 1.0 + vec(H), "ln2_b": vec(H),
            "Wq": dense(H, H), "Wk": dense(H, H),
            "Wv": dense(H, H), "Wo": dense(H, H),
            "mlp_w1": dense(H, mlp_num_hiddens), "mlp_b1": vec(mlp_num_hiddens),
            "mlp_w2": dense(mlp_num_hiddens, H), "mlp_b2": vec(H),
        })
    return params


def prepare_params(p):
    """Cast matmul weights to bf16, fuse W_qkv, reshape small vectors to (1, N)."""
    bf = jnp.bfloat16
    H = p["cls_token"].shape[-1]
    out = {
        "patch_w": p["patch_w"].astype(bf),
        "patch_b": p["patch_b"].reshape(1, H).astype(jnp.float32),
        "pos_patch": p["pos_embedding"][0, 1:, :].astype(jnp.float32),
        "cls_pos": (p["cls_token"] + p["pos_embedding"][:, :1, :]).astype(bf),
        "head_ln_g": p["head_ln_g"].reshape(1, H),
        "head_ln_b": p["head_ln_b"].reshape(1, H),
        "head_w": p["head_w"].astype(bf),
        "head_b": p["head_b"].reshape(1, -1).astype(jnp.float32),
        "blocks": [],
    }
    for b in p["blocks"]:
        out["blocks"].append({
            "ln1_g": b["ln1_g"].reshape(1, H), "ln1_b": b["ln1_b"].reshape(1, H),
            "ln2_g": b["ln2_g"].reshape(1, H), "ln2_b": b["ln2_b"].reshape(1, H),
            "Wqkv": jnp.concatenate([b["Wq"], b["Wk"], b["Wv"]], axis=1).astype(bf),
            "Wo": b["Wo"].astype(bf),
            "mlp_w1": b["mlp_w1"].astype(bf),
            "mlp_b1": b["mlp_b1"].reshape(1, -1).astype(jnp.float32),
            "mlp_w2": b["mlp_w2"].astype(bf),
            "mlp_b2": b["mlp_b2"].reshape(1, H).astype(jnp.float32),
        })
    return out


def reference_vit(X_img, params, *, patch_size, num_heads):
    """Pure-JAX reference mirroring the kernel numerics (bf16 MXU, f32 epilogues)."""
    bf, f32 = jnp.bfloat16, jnp.float32

    def mm(a, w):
        return jnp.dot(a.astype(bf), w.astype(bf), preferred_element_type=f32)

    def ln(x, g, b):
        mu = jnp.mean(x, axis=-1, keepdims=True)
        c = x - mu
        var = jnp.mean(c * c, axis=-1, keepdims=True)
        return c * jax.lax.rsqrt(var + EPS) * g + b

    B, C, Hi, Wi = X_img.shape
    ph = pw = patch_size
    Hp, Wp = Hi // ph, Wi // pw
    H = params["cls_token"].shape[-1]
    d = H // num_heads

    patches = (X_img.reshape(B, C, Hp, ph, Wp, pw)
                    .transpose(0, 2, 4, 1, 3, 5)
                    .reshape(B, Hp * Wp, C * ph * pw)).astype(bf)
    emb = (mm(patches, params["patch_w"]) + params["patch_b"]
           + params["pos_embedding"][:, 1:, :]).astype(bf)
    cls_row = (params["cls_token"] + params["pos_embedding"][:, :1, :]).astype(bf)
    X = jnp.concatenate([jnp.broadcast_to(cls_row, (B, 1, H)), emb], axis=1)

    for p in params["blocks"]:
        x = X.astype(f32)
        S = x.shape[1]
        x_ln1 = ln(x, p["ln1_g"], p["ln1_b"])
        q, k, v = mm(x_ln1, p["Wq"]), mm(x_ln1, p["Wk"]), mm(x_ln1, p["Wv"])

        def heads(t):
            return t.reshape(B, S, num_heads, d).transpose(0, 2, 1, 3)

        s = jnp.einsum("bhqd,bhkd->bhqk", heads(q).astype(bf), heads(k).astype(bf),
                       preferred_element_type=f32) / math.sqrt(d)
        m = jnp.max(s, axis=-1, keepdims=True)
        pr = jnp.exp(s - m)
        pr = pr / jnp.sum(pr, axis=-1, keepdims=True)
        o = jnp.einsum("bhqk,bhkd->bhqd", pr.astype(bf), heads(v).astype(bf),
                       preferred_element_type=f32)
        o = o.transpose(0, 2, 1, 3).reshape(B, S, H)
        x = x + mm(o, p["Wo"])
        x_ln2 = ln(x, p["ln2_g"], p["ln2_b"])
        h1 = _gelu_tanh(mm(x_ln2, p["mlp_w1"]) + p["mlp_b1"])
        x = x + mm(h1, p["mlp_w2"]) + p["mlp_b2"]
        X = x.astype(bf)

    cls_tok = X[:, 0].astype(f32)
    hN = ln(cls_tok, params["head_ln_g"], params["head_ln_b"])
    return mm(hN, params["head_w"]) + params["head_b"]


if __name__ == "__main__":
    # Small, lane-dense config (hidden dims are multiples of 128).
    batch, in_channels = 2, 3
    img_size, patch_size = 32, 8           # 4x4 = 16 patches -> seq = 17
    num_hiddens, mlp_num_hiddens = 128, 256
    num_heads, num_blks, num_classes = 2, 2, 10
    num_patches = (img_size // patch_size) ** 2

    key = jax.random.PRNGKey(0)
    k_img, k_par = jax.random.split(key)
    X_img = jax.random.normal(k_img, (batch, in_channels, img_size, img_size),
                              dtype=jnp.float32)
    params = init_params(k_par, in_channels=in_channels, patch_size=patch_size,
                         num_hiddens=num_hiddens, mlp_num_hiddens=mlp_num_hiddens,
                         num_blks=num_blks, num_patches=num_patches,
                         num_classes=num_classes)
    kparams = prepare_params(params)

    fwd = jax.jit(functools.partial(vit_forward, patch_size=patch_size,
                                    num_heads=num_heads))
    logits = fwd(X_img, kparams)
    jax.block_until_ready(logits)
    assert logits.shape == (batch, num_classes)

    ref = reference_vit(X_img, params, patch_size=patch_size, num_heads=num_heads)
    max_err = float(jnp.max(jnp.abs(logits - ref)))
    assert jnp.allclose(logits, ref, atol=5e-2, rtol=5e-2), (
        f"mismatch vs reference, max abs err = {max_err}")

    print("KERNEL_OK")
</pallas_src>

<mosaic_0001>
module attributes {stable_mosaic.version = 11 : i64} {
  func.func @_patch_embed_kernel(%arg0: i32, %arg1: memref<1x16x192xbf16, #tpu.memory_space<vmem>>, %arg2: memref<192x128xbf16, #tpu.memory_space<vmem>>, %arg3: memref<1x128xf32, #tpu.memory_space<vmem>>, %arg4: memref<16x128xf32, #tpu.memory_space<vmem>>, %arg5: memref<1x16x128xbf16, #tpu.memory_space<vmem>>) attributes {dimension_semantics = [#tpu.dimension_semantics<parallel>], iteration_bounds = array<i64: 2>, scalar_prefetch = 0 : i64, scratch_operands = 0 : i64, tpu.core_type = #tpu.core_type<tc>, window_params = [{transform_indices = @transform_0, window_bounds = array<i64: 1, 16, 192>}, {pipeline_mode = #tpu.pipeline_mode<synchronous>, transform_indices = @transform_1, window_bounds = array<i64: 192, 128>}, {pipeline_mode = #tpu.pipeline_mode<synchronous>, transform_indices = @transform_2, window_bounds = array<i64: 1, 128>}, {pipeline_mode = #tpu.pipeline_mode<synchronous>, transform_indices = @transform_3, window_bounds = array<i64: 16, 128>}, {transform_indices = @transform_4, window_bounds = array<i64: 1, 16, 128>}]} {
    %c0 = arith.constant 0 : index
    %c0_0 = arith.constant 0 : index
    %c0_1 = arith.constant 0 : index
    %0 = vector.load %arg1[%c0, %c0_0, %c0_1] : memref<1x16x192xbf16, #tpu.memory_space<vmem>>, vector<1x16x192xbf16>
    %1 = vector.shape_cast %0 : vector<1x16x192xbf16> to vector<16x192xbf16>
    %c0_2 = arith.constant 0 : index
    %c0_3 = arith.constant 0 : index
    %2 = vector.load %arg2[%c0_2, %c0_3] : memref<192x128xbf16, #tpu.memory_space<vmem>>, vector<192x128xbf16>
    %cst = arith.constant dense<0.000000e+00> : vector<16x128xf32>
    %3 = tpu.matmul %1, %2, %cst {dimension_numbers = #tpu.dot_dimension_numbers<[1], [0], [0], [1], [0, 0, 1, 1], [], []>} : vector<16x192xbf16>, vector<192x128xbf16>, vector<16x128xf32> -> vector<16x128xf32>
    %c0_4 = arith.constant 0 : index
    %c0_5 = arith.constant 0 : index
    %4 = vector.load %arg3[%c0_4, %c0_5] : memref<1x128xf32, #tpu.memory_space<vmem>>, vector<1x128xf32>
    %5 = vector.broadcast %4 : vector<1x128xf32> to vector<16x128xf32>
    %6 = arith.addf %3, %5 : vector<16x128xf32>
    %c0_6 = arith.constant 0 : index
    %c0_7 = arith.constant 0 : index
    %7 = vector.load %arg4[%c0_6, %c0_7] : memref<16x128xf32, #tpu.memory_space<vmem>>, vector<16x128xf32>
    %8 = arith.addf %6, %7 : vector<16x128xf32>
    %9 = arith.truncf %8 : vector<16x128xf32> to vector<16x128xbf16>
    %c0_8 = arith.constant 0 : index
    %c0_9 = arith.constant 0 : index
    %c0_10 = arith.constant 0 : index
    %10 = vector.load %arg5[%c0_8, %c0_9, %c0_10] : memref<1x16x128xbf16, #tpu.memory_space<vmem>>, vector<1x16x128xbf16>
    %11 = vector.shape_cast %10 : vector<1x16x128xbf16> to vector<16x128xbf16>
    %12 = vector.shape_cast %9 : vector<16x128xbf16> to vector<1x16x128xbf16>
    tpu.vector_store %arg5[%c0_8, %c0_9, %c0_10], %12 {strides = array<i32>} : memref<1x16x128xbf16, #tpu.memory_space<vmem>>, vector<1x16x128xbf16>,
    return
  }
  func.func @transform_0(%arg0: i32) -> (i32, i32, i32) {
    %c0_i32 = arith.constant 0 : i32
    %c0_i32_0 = arith.constant 0 : i32
    %c0_i32_1 = arith.constant 0 : i32
    return %arg0, %c0_i32, %c0_i32_0 : i32, i32, i32
  }
  func.func @transform_1(%arg0: i32) -> (i32, i32) {
    %c0_i32 = arith.constant 0 : i32
    %c0_i32_0 = arith.constant 0 : i32
    %c0_i32_1 = arith.constant 0 : i32
    return %c0_i32, %c0_i32_0 : i32, i32
  }
  func.func @transform_2(%arg0: i32) -> (i32, i32) {
    %c0_i32 = arith.constant 0 : i32
    %c0_i32_0 = arith.constant 0 : i32
    %c0_i32_1 = arith.constant 0 : i32
    return %c0_i32, %c0_i32_0 : i32, i32
  }
  func.func @transform_3(%arg0: i32) -> (i32, i32) {
    %c0_i32 = arith.constant 0 : i32
    %c0_i32_0 = arith.constant 0 : i32
    %c0_i32_1 = arith.constant 0 : i32
    return %c0_i32, %c0_i32_0 : i32, i32
  }
  func.func @transform_4(%arg0: i32) -> (i32, i32, i32) {
    %c0_i32 = arith.constant 0 : i32
    %c0_i32_0 = arith.constant 0 : i32
    %c0_i32_1 = arith.constant 0 : i32
    return %arg0, %c0_i32, %c0_i32_0 : i32, i32, i32
  }
}

module attributes {stable_mosaic.version = 11 : i64} {
  func.func @_head_kernel(%arg0: i32, %arg1: memref<2x128xbf16, #tpu.memory_space<vmem>>, %arg2: memref<1x128xf32, #tpu.memory_space<vmem>>, %arg3: memref<1x128xf32, #tpu.memory_space<vmem>>, %arg4: memref<128x10xbf16, #tpu.memory_space<vmem>>, %arg5: memref<1x10xf32, #tpu.memory_space<vmem>>, %arg6: memref<2x10xf32, #tpu.memory_space<vmem>>) attributes {dimension_semantics = [#tpu.dimension_semantics<arbitrary>], iteration_bounds = array<i64: 1>, scalar_prefetch = 0 : i64, scratch_operands = 0 : i64, tpu.core_type = #tpu.core_type<tc>, window_params = [{pipeline_mode = #tpu.pipeline_mode<synchronous>, transform_indices = @transform_0, window_bounds = array<i64: 2, 128>}, {pipeline_mode = #tpu.pipeline_mode<synchronous>, transform_indices = @transform_1, window_bounds = array<i64: 1, 128>}, {pipeline_mode = #tpu.pipeline_mode<synchronous>, transform_indices = @transform_2, window_bounds = array<i64: 1, 128>}, {pipeline_mode = #tpu.pipeline_mode<synchronous>, transform_indices = @transform_3, window_bounds = array<i64: 128, 10>}, {pipeline_mode = #tpu.pipeline_mode<synchronous>, transform_indices = @transform_4, window_bounds = array<i64: 1, 10>}, {pipeline_mode = #tpu.pipeline_mode<synchronous>, transform_indices = @transform_5, window_bounds = array<i64: 2, 10>}]} {
    %c0 = arith.constant 0 : index
    %c0_0 = arith.constant 0 : index
    %0 = vector.load %arg1[%c0, %c0_0] : memref<2x128xbf16, #tpu.memory_space<vmem>>, vector<2x128xbf16>
    %1 = arith.extf %0 : vector<2x128xbf16> to vector<2x128xf32>
    %cst = arith.constant dense<0.000000e+00> : vector<2xf32>
    %2 = vector.multi_reduction <add>, %1, %cst [1] : vector<2x128xf32> to vector<2xf32>
    %3 = vector.shape_cast %2 : vector<2xf32> to vector<2x1xf32>
    %cst_1 = arith.constant 1.280000e+02 : f32
    %4 = vector.broadcast %cst_1 : f32 to vector<2x1xf32>
    %5 = arith.divf %3, %4 : vector<2x1xf32>
    %6 = vector.broadcast %5 : vector<2x1xf32> to vector<2x128xf32>
    %7 = arith.subf %1, %6 : vector<2x128xf32>
    %8 = arith.mulf %7, %7 : vector<2x128xf32>
    %cst_2 = arith.constant dense<0.000000e+00> : vector<2xf32>
    %9 = vector.multi_reduction <add>, %8, %cst_2 [1] : vector<2x128xf32> to vector<2xf32>
    %10 = vector.shape_cast %9 : vector<2xf32> to vector<2x1xf32>
    %cst_3 = arith.constant 1.280000e+02 : f32
    %11 = vector.broadcast %cst_3 : f32 to vector<2x1xf32>
    %12 = arith.divf %10, %11 : vector<2x1xf32>
    %cst_4 = arith.constant 9.99999974E-6 : f32
    %13 = vector.broadcast %cst_4 : f32 to vector<2x1xf32>
    %14 = arith.addf %12, %13 : vector<2x1xf32>
    %15 = math.rsqrt %14 : vector<2x1xf32>
    %16 = vector.broadcast %15 : vector<2x1xf32> to vector<2x128xf32>
    %17 = arith.mulf %7, %16 : vector<2x128xf32>
    %c0_5 = arith.constant 0 : index
    %c0_6 = arith.constant 0 : index
    %18 = vector.load %arg2[%c0_5, %c0_6] : memref<1x128xf32, #tpu.memory_space<vmem>>, vector<1x128xf32>
    %19 = vector.broadcast %18 : vector<1x128xf32> to vector<2x128xf32>
    %20 = arith.mulf %17, %19 : vector<2x128xf32>
    %c0_7 = arith.constant 0 : index
    %c0_8 = arith.constant 0 : index
    %21 = vector.load %arg3[%c0_7, %c0_8] : memref<1x128xf32, #tpu.memory_space<vmem>>, vector<1x128xf32>
    %22 = vector.broadcast %21 : vector<1x128xf32> to vector<2x128xf32>
    %23 = arith.addf %20, %22 : vector<2x128xf32>
    %24 = arith.truncf %23 : vector<2x128xf32> to vector<2x128xbf16>
    %c0_9 = arith.constant 0 : index
    %c0_10 = arith.constant 0 : index
    %25 = vector.load %arg4[%c0_9, %c0_10] : memref<128x10xbf16, #tpu.memory_space<vmem>>, vector<128x10xbf16>
    %cst_11 = arith.constant dense<0.000000e+00> : vector<2x10xf32>
    %26 = tpu.matmul %24, %25, %cst_11 {dimension_numbers = #tpu.dot_dimension_numbers<[1], [0], [0], [1], [0, 0, 1, 1], [], []>} : vector<2x128xbf16>, vector<128x10xbf16>, vector<2x10xf32> -> vector<2x10xf32>
    %c0_12 = arith.constant 0 : index
    %c0_13 = arith.constant 0 : index
    %27 = vector.load %arg5[%c0_12, %c0_13] : memref<1x10xf32, #tpu.memory_space<vmem>>, vector<1x10xf32>
    %28 = vector.broadcast %27 : vector<1x10xf32> to vector<2x10xf32>
    %29 = arith.addf %26, %28 : vector<2x10xf32>
    %c0_14 = arith.constant 0 : index
    %c0_15 = arith.constant 0 : index
    %30 = vector.load %arg6[%c0_14, %c0_15] : memref<2x10xf32, #tpu.memory_space<vmem>>, vector<2x10xf32>
    tpu.vector_store %arg6[%c0_14, %c0_15], %29 {strides = array<i32>} : memref<2x10xf32, #tpu.memory_space<vmem>>, vector<2x10xf32>,
    return
  }
  func.func @transform_0(%arg0: i32) -> (i32, i32) {
    %c0_i32 = arith.constant 0 : i32
    %c0_i32_0 = arith.constant 0 : i32
    %c0_i32_1 = arith.constant 0 : i32
    return %c0_i32, %c0_i32_0 : i32, i32
  }
  func.func @transform_1(%arg0: i32) -> (i32, i32) {
    %c0_i32 = arith.constant 0 : i32
    %c0_i32_0 = arith.constant 0 : i32
    %c0_i32_1 = arith.constant 0 : i32
    return %c0_i32, %c0_i32_0 : i32, i32
  }
  func.func @transform_2(%arg0: i32) -> (i32, i32) {
    %c0_i32 = arith.constant 0 : i32
    %c0_i32_0 = arith.constant 0 : i32
    %c0_i32_1 = arith.constant 0 : i32
    return %c0_i32, %c0_i32_0 : i32, i32
  }
  func.func @transform_3(%arg0: i32) -> (i32, i32) {
    %c0_i32 = arith.constant 0 : i32
    %c0_i32_0 = arith.constant 0 : i32
    %c0_i32_1 = arith.constant 0 : i32
    return %c0_i32, %c0_i32_0 : i32, i32
  }
  func.func @transform_4(%arg0: i32) -> (i32, i32) {
    %c0_i32 = arith.constant 0 : i32
    %c0_i32_0 = arith.constant 0 : i32
    %c0_i32_1 = arith.constant 0 : i32
    return %c0_i32, %c0_i32_0 : i32, i32
  }
  func.func @transform_5(%arg0: i32) -> (i32, i32) {
    %c0_i32 = arith.constant 0 : i32
    %c0_i32_0 = arith.constant 0 : i32
    %c0_i32_1 = arith.constant 0 : i32
    return %c0_i32, %c0_i32_0 : i32, i32
  }
}

module attributes {stable_mosaic.version = 11 : i64} {
  func.func @_vit_block_kernel(%arg0: i32, %arg1: memref<1x17x128xbf16, #tpu.memory_space<vmem>>, %arg2: memref<1x128xf32, #tpu.memory_space<vmem>>, %arg3: memref<1x128xf32, #tpu.memory_space<vmem>>, %arg4: memref<128x384xbf16, #tpu.memory_space<vmem>>, %arg5: memref<128x128xbf16, #tpu.memory_space<vmem>>, %arg6: memref<1x128xf32, #tpu.memory_space<vmem>>, %arg7: memref<1x128xf32, #tpu.memory_space<vmem>>, %arg8: memref<128x256xbf16, #tpu.memory_space<vmem>>, %arg9: memref<1x256xf32, #tpu.memory_space<vmem>>, %arg10: memref<256x128xbf16, #tpu.memory_space<vmem>>, %arg11: memref<1x128xf32, #tpu.memory_space<vmem>>, %arg12: memref<1x17x128xbf16, #tpu.memory_space<vmem>>) attributes {dimension_semantics = [#tpu.dimension_semantics<parallel>], iteration_bounds = array<i64: 2>, scalar_prefetch = 0 : i64, scratch_operands = 0 : i64, tpu.core_type = #tpu.core_type<tc>, window_params = [{transform_indices = @transform_0, window_bounds = array<i64: 1, 17, 128>}, {pipeline_mode = #tpu.pipeline_mode<synchronous>, transform_indices = @transform_1, window_bounds = array<i64: 1, 128>}, {pipeline_mode = #tpu.pipeline_mode<synchronous>, transform_indices = @transform_2, window_bounds = array<i64: 1, 128>}, {pipeline_mode = #tpu.pipeline_mode<synchronous>, transform_indices = @transform_3, window_bounds = array<i64: 128, 384>}, {pipeline_mode = #tpu.pipeline_mode<synchronous>, transform_indices = @transform_4, window_bounds = array<i64: 128, 128>}, {pipeline_mode = #tpu.pipeline_mode<synchronous>, transform_indices = @transform_5, window_bounds = array<i64: 1, 128>}, {pipeline_mode = #tpu.pipeline_mode<synchronous>, transform_indices = @transform_6, window_bounds = array<i64: 1, 128>}, {pipeline_mode = #tpu.pipeline_mode<synchronous>, transform_indices = @transform_7, window_bounds = array<i64: 128, 256>}, {pipeline_mode = #tpu.pipeline_mode<synchronous>, transform_indices = @transform_8, window_bounds = array<i64: 1, 256>}, {pipeline_mode = #tpu.pipeline_mode<synchronous>, transform_indices = @transform_9, window_bounds = array<i64: 256, 128>}, {pipeline_mode = #tpu.pipeline_mode<synchronous>, transform_indices = @transform_10, window_bounds = array<i64: 1, 128>}, {transform_indices = @transform_11, window_bounds = array<i64: 1, 17, 128>}]} {
    %c0 = arith.constant 0 : index
    %c0_0 = arith.constant 0 : index
    %c0_1 = arith.constant 0 : index
    %0 = vector.load %arg1[%c0, %c0_0, %c0_1] : memref<1x17x128xbf16, #tpu.memory_space<vmem>>, vector<1x17x128xbf16>
    %1 = vector.shape_cast %0 : vector<1x17x128xbf16> to vector<17x128xbf16>
    %2 = arith.extf %1 : vector<17x128xbf16> to vector<17x128xf32>
    %cst = arith.constant dense<0.000000e+00> : vector<17xf32>
    %3 = vector.multi_reduction <add>, %2, %cst [1] : vector<17x128xf32> to vector<17xf32>
    %4 = vector.shape_cast %3 : vector<17xf32> to vector<17x1xf32>
    %cst_2 = arith.constant 1.280000e+02 : f32
    %5 = vector.broadcast %cst_2 : f32 to vector<17x1xf32>
    %6 = arith.divf %4, %5 : vector<17x1xf32>
    %7 = vector.broadcast %6 : vector<17x1xf32> to vector<17x128xf32>
    %8 = arith.subf %2, %7 : vector<17x128xf32>
    %9 = arith.mulf %8, %8 : vector<17x128xf32>
    %cst_3 = arith.constant dense<0.000000e+00> : vector<17xf32>
    %10 = vector.multi_reduction <add>, %9, %cst_3 [1] : vector<17x128xf32> to vector<17xf32>
    %11 = vector.shape_cast %10 : vector<17xf32> to vector<17x1xf32>
    %cst_4 = arith.constant 1.280000e+02 : f32
    %12 = vector.broadcast %cst_4 : f32 to vector<17x1xf32>
    %13 = arith.divf %11, %12 : vector<17x1xf32>
    %cst_5 = arith.constant 9.99999974E-6 : f32
    %14 = vector.broadcast %cst_5 : f32 to vector<17x1xf32>
    %15 = arith.addf %13, %14 : vector<17x1xf32>
    %16 = math.rsqrt %15 : vector<17x1xf32>
    %17 = vector.broadcast %16 : vector<17x1xf32> to vector<17x128xf32>
    %18 = arith.mulf %8, %17 : vector<17x128xf32>
    %c0_6 = arith.constant 0 : index
    %c0_7 = arith.constant 0 : index
    %19 = vector.load %arg2[%c0_6, %c0_7] : memref<1x128xf32, #tpu.memory_space<vmem>>, vector<1x128xf32>
    %20 = vector.broadcast %19 : vector<1x128xf32> to vector<17x128xf32>
    %21 = arith.mulf %18, %20 : vector<17x128xf32>
    %c0_8 = arith.constant 0 : index
    %c0_9 = arith.constant 0 : index
    %22 = vector.load %arg3[%c0_8, %c0_9] : memref<1x128xf32, #tpu.memory_space<vmem>>, vector<1x128xf32>
    %23 = vector.broadcast %22 : vector<1x128xf32> to vector<17x128xf32>
    %24 = arith.addf %21, %23 : vector<17x128xf32>
    %c0_10 = arith.constant 0 : index
    %c0_11 = arith.constant 0 : index
    %25 = vector.load %arg4[%c0_10, %c0_11] : memref<128x384xbf16, #tpu.memory_space<vmem>>, vector<128x384xbf16>
    %26 = arith.truncf %24 : vector<17x128xf32> to vector<17x128xbf16>
    %cst_12 = arith.constant dense<0.000000e+00> : vector<17x384xf32>
    %27 = tpu.matmul %26, %25, %cst_12 {dimension_numbers = #tpu.dot_dimension_numbers<[1], [0], [0], [1], [0, 0, 1, 1], [], []>} : vector<17x128xbf16>, vector<128x384xbf16>, vector<17x384xf32> -> vector<17x384xf32>
    %28 = vector.extract_strided_slice %27 {offsets = [0, 0], sizes = [17, 64], strides = [1, 1]} : vector<17x384xf32> to vector<17x64xf32>
    %29 = vector.extract_strided_slice %27 {offsets = [0, 128], sizes = [17, 64], strides = [1, 1]} : vector<17x384xf32> to vector<17x64xf32>
    %30 = vector.extract_strided_slice %27 {offsets = [0, 256], sizes = [17, 64], strides = [1, 1]} : vector<17x384xf32> to vector<17x64xf32>
    %31 = arith.truncf %28 : vector<17x64xf32> to vector<17x64xbf16>
    %32 = arith.truncf %29 : vector<17x64xf32> to vector<17x64xbf16>
    %cst_13 = arith.constant dense<0.000000e+00> : vector<17x17xf32>
    %33 = tpu.matmul %31, %32, %cst_13 {dimension_numbers = #tpu.dot_dimension_numbers<[1], [1], [0], [0], [0, 0, 1, 0], [], []>} : vector<17x64xbf16>, vector<17x64xbf16>, vector<17x17xf32> -> vector<17x17xf32>
    %cst_14 = arith.constant 1.250000e-01 : f32
    %34 = vector.broadcast %cst_14 : f32 to vector<17x17xf32>
    %35 = arith.mulf %33, %34 : vector<17x17xf32>
    %cst_15 = arith.constant dense<0xFF800000> : vector<17xf32>
    %36 = vector.multi_reduction <maximumf>, %35, %cst_15 [1] : vector<17x17xf32> to vector<17xf32>
    %37 = vector.shape_cast %36 : vector<17xf32> to vector<17x1xf32>
    %38 = vector.broadcast %37 : vector<17x1xf32> to vector<17x17xf32>
    %39 = arith.subf %35, %38 : vector<17x17xf32>
    %40 = math.exp %39 : vector<17x17xf32>
    %cst_16 = arith.constant dense<0.000000e+00> : vector<17xf32>
    %41 = vector.multi_reduction <add>, %40, %cst_16 [1] : vector<17x17xf32> to vector<17xf32>
    %42 = vector.shape_cast %41 : vector<17xf32> to vector<17x1xf32>
    %43 = tpu.reciprocal %42 {approx = true} : vector<17x1xf32> -> vector<17x1xf32>
    %44 = vector.broadcast %43 : vector<17x1xf32> to vector<17x17xf32>
    %45 = arith.mulf %40, %44 : vector<17x17xf32>
    %46 = arith.truncf %45 : vector<17x17xf32> to vector<17x17xbf16>
    %47 = arith.truncf %30 : vector<17x64xf32> to vector<17x64xbf16>
    %cst_17 = arith.constant dense<0.000000e+00> : vector<17x64xf32>
    %48 = tpu.matmul %46, %47, %cst_17 {dimension_numbers = #tpu.dot_dimension_numbers<[1], [0], [0], [1], [0, 0, 1, 1], [], []>} : vector<17x17xbf16>, vector<17x64xbf16>, vector<17x64xf32> -> vector<17x64xf32>
    %49 = arith.truncf %48 : vector<17x64xf32> to vector<17x64xbf16>
    %c0_18 = arith.constant 0 : index
    %c0_19 = arith.constant 0 : index
    %50 = vector.load %arg5[%c0_18, %c0_19] : memref<128x128xbf16, #tpu.memory_space<vmem>>, vector<64x128xbf16>
    %cst_20 = arith.constant dense<0.000000e+00> : vector<17x128xf32>
    %51 = tpu.matmul %49, %50, %cst_20 {dimension_numbers = #tpu.dot_dimension_numbers<[1], [0], [0], [1], [0, 0, 1, 1], [], []>} : vector<17x64xbf16>, vector<64x128xbf16>, vector<17x128xf32> -> vector<17x128xf32>
    %52 = vector.extract_strided_slice %27 {offsets = [0, 64], sizes = [17, 64], strides = [1, 1]} : vector<17x384xf32> to vector<17x64xf32>
    %53 = vector.extract_strided_slice %27 {offsets = [0, 192], sizes = [17, 64], strides = [1, 1]} : vector<17x384xf32> to vector<17x64xf32>
    %54 = vector.extract_strided_slice %27 {offsets = [0, 320], sizes = [17, 64], strides = [1, 1]} : vector<17x384xf32> to vector<17x64xf32>
    %55 = arith.truncf %52 : vector<17x64xf32> to vector<17x64xbf16>
    %56 = arith.truncf %53 : vector<17x64xf32> to vector<17x64xbf16>
    %cst_21 = arith.constant dense<0.000000e+00> : vector<17x17xf32>
    %57 = tpu.matmul %55, %56, %cst_21 {dimension_numbers = #tpu.dot_dimension_numbers<[1], [1], [0], [0], [0, 0, 1, 0], [], []>} : vector<17x64xbf16>, vector<17x64xbf16>, vector<17x17xf32> -> vector<17x17xf32>
    %cst_22 = arith.constant 1.250000e-01 : f32
    %58 = vector.broadcast %cst_22 : f32 to vector<17x17xf32>
    %59 = arith.mulf %57, %58 : vector<17x17xf32>
    %cst_23 = arith.constant dense<0xFF800000> : vector<17xf32>
    %60 = vector.multi_reduction <maximumf>, %59, %cst_23 [1] : vector<17x17xf32> to vector<17xf32>
    %61 = vector.shape_cast %60 : vector<17xf32> to vector<17x1xf32>
    %62 = vector.broadcast %61 : vector<17x1xf32> to vector<17x17xf32>
    %63 = arith.subf %59, %62 : vector<17x17xf32>
    %64 = math.exp %63 : vector<17x17xf32>
    %cst_24 = arith.constant dense<0.000000e+00> : vector<17xf32>
    %65 = vector.multi_reduction <add>, %64, %cst_24 [1] : vector<17x17xf32> to vector<17xf32>
    %66 = vector.shape_cast %65 : vector<17xf32> to vector<17x1xf32>
    %67 = tpu.reciprocal %66 {approx = true} : vector<17x1xf32> -> vector<17x1xf32>
    %68 = vector.broadcast %67 : vector<17x1xf32> to vector<17x17xf32>
    %69 = arith.mulf %64, %68 : vector<17x17xf32>
    %70 = arith.truncf %69 : vector<17x17xf32> to vector<17x17xbf16>
    %71 = arith.truncf %54 : vector<17x64xf32> to vector<17x64xbf16>
    %cst_25 = arith.constant dense<0.000000e+00> : vector<17x64xf32>
    %72 = tpu.matmul %70, %71, %cst_25 {dimension_numbers = #tpu.dot_dimension_numbers<[1], [0], [0], [1], [0, 0, 1, 1], [], []>} : vector<17x17xbf16>, vector<17x64xbf16>, vector<17x64xf32> -> vector<17x64xf32>
    %73 = arith.truncf %72 : vector<17x64xf32> to vector<17x64xbf16>
    %c64 = arith.constant 64 : index
    %c0_26 = arith.constant 0 : index
    %74 = vector.load %arg5[%c64, %c0_26] : memref<128x128xbf16, #tpu.memory_space<vmem>>, vector<64x128xbf16>
    %cst_27 = arith.constant dense<0.000000e+00> : vector<17x128xf32>
    %75 = tpu.matmul %73, %74, %cst_27 {dimension_numbers = #tpu.dot_dimension_numbers<[1], [0], [0], [1], [0, 0, 1, 1], [], []>} : vector<17x64xbf16>, vector<64x128xbf16>, vector<17x128xf32> -> vector<17x128xf32>
    %76 = arith.addf %51, %75 : vector<17x128xf32>
    %77 = arith.addf %2, %76 : vector<17x128xf32>
    %cst_28 = arith.constant dense<0.000000e+00> : vector<17xf32>
    %78 = vector.multi_reduction <add>, %77, %cst_28 [1] : vector<17x128xf32> to vector<17xf32>
    %79 = vector.shape_cast %78 : vector<17xf32> to vector<17x1xf32>
    %cst_29 = arith.constant 1.280000e+02 : f32
    %80 = vector.broadcast %cst_29 : f32 to vector<17x1xf32>
    %81 = arith.divf %79, %80 : vector<17x1xf32>
    %82 = vector.broadcast %81 : vector<17x1xf32> to vector<17x128xf32>
    %83 = arith.subf %77, %82 : vector<17x128xf32>
    %84 = arith.mulf %83, %83 : vector<17x128xf32>
    %cst_30 = arith.constant dense<0.000000e+00> : vector<17xf32>
    %85 = vector.multi_reduction <add>, %84, %cst_30 [1] : vector<17x128xf32> to vector<17xf32>
    %86 = vector.shape_cast %85 : vector<17xf32> to vector<17x1xf32>
    %cst_31 = arith.constant 1.280000e+02 : f32
    %87 = vector.broadcast %cst_31 : f32 to vector<17x1xf32>
    %88 = arith.divf %86, %87 : vector<17x1xf32>
    %cst_32 = arith.constant 9.99999974E-6 : f32
    %89 = vector.broadcast %cst_32 : f32 to vector<17x1xf32>
    %90 = arith.addf %88, %89 : vector<17x1xf32>
    %91 = math.rsqrt %90 : vector<17x1xf32>
    %92 = vector.broadcast %91 : vector<17x1xf32> to vector<17x128xf32>
    %93 = arith.mulf %83, %92 : vector<17x128xf32>
    %c0_33 = arith.constant 0 : index
    %c0_34 = arith.constant 0 : index
    %94 = vector.load %arg6[%c0_33, %c0_34] : memref<1x128xf32, #tpu.memory_space<vmem>>, vector<1x128xf32>
    %95 = vector.broadcast %94 : vector<1x128xf32> to vector<17x128xf32>
    %96 = arith.mulf %93, %95 : vector<17x128xf32>
    %c0_35 = arith.constant 0 : index
    %c0_36 = arith.constant 0 : index
    %97 = vector.load %arg7[%c0_35, %c0_36] : memref<1x128xf32, #tpu.memory_space<vmem>>, vector<1x128xf32>
    %98 = vector.broadcast %97 : vector<1x128xf32> to vector<17x128xf32>
    %99 = arith.addf %96, %98 : vector<17x128xf32>
    %c0_37 = arith.constant 0 : index
    %c0_38 = arith.constant 0 : index
    %100 = vector.load %arg8[%c0_37, %c0_38] : memref<128x256xbf16, #tpu.memory_space<vmem>>, vector<128x256xbf16>
    %101 = arith.truncf %99 : vector<17x128xf32> to vector<17x128xbf16>
    %cst_39 = arith.constant dense<0.000000e+00> : vector<17x256xf32>
    %102 = tpu.matmul %101, %100, %cst_39 {dimension_numbers = #tpu.dot_dimension_numbers<[1], [0], [0], [1], [0, 0, 1, 1], [], []>} : vector<17x128xbf16>, vector<128x256xbf16>, vector<17x256xf32> -> vector<17x256xf32>
    %c0_40 = arith.constant 0 : index
    %c0_41 = arith.constant 0 : index
    %103 = vector.load %arg9[%c0_40, %c0_41] : memref<1x256xf32, #tpu.memory_space<vmem>>, vector<1x256xf32>
    %104 = vector.broadcast %103 : vector<1x256xf32> to vector<17x256xf32>
    %105 = arith.addf %102, %104 : vector<17x256xf32>
    %cst_42 = arith.constant 5.000000e-01 : f32
    %106 = vector.broadcast %cst_42 : f32 to vector<17x256xf32>
    %107 = arith.mulf %106, %105 : vector<17x256xf32>
    %cst_43 = arith.constant 4.471500e-02 : f32
    %108 = vector.broadcast %cst_43 : f32 to vector<17x256xf32>
    %109 = arith.mulf %108, %105 : vector<17x256xf32>
    %110 = arith.mulf %109, %105 : vector<17x256xf32>
    %111 = arith.mulf %110, %105 : vector<17x256xf32>
    %112 = arith.addf %105, %111 : vector<17x256xf32>
    %cst_44 = arith.constant 0.797884583 : f32
    %113 = vector.broadcast %cst_44 : f32 to vector<17x256xf32>
    %114 = arith.mulf %113, %112 : vector<17x256xf32>
    %115 = math.tanh %114 : vector<17x256xf32>
    %cst_45 = arith.constant 1.000000e+00 : f32
    %116 = vector.broadcast %cst_45 : f32 to vector<17x256xf32>
    %117 = arith.addf %116, %115 : vector<17x256xf32>
    %118 = arith.mulf %107, %117 : vector<17x256xf32>
    %c0_46 = arith.constant 0 : index
    %c0_47 = arith.constant 0 : index
    %119 = vector.load %arg10[%c0_46, %c0_47] : memref<256x128xbf16, #tpu.memory_space<vmem>>, vector<256x128xbf16>
    %120 = arith.truncf %118 : vector<17x256xf32> to vector<17x256xbf16>
    %cst_48 = arith.constant dense<0.000000e+00> : vector<17x128xf32>
    %121 = tpu.matmul %120, %119, %cst_48 {dimension_numbers = #tpu.dot_dimension_numbers<[1], [0], [0], [1], [0, 0, 1, 1], [], []>} : vector<17x256xbf16>, vector<256x128xbf16>, vector<17x128xf32> -> vector<17x128xf32>
    %122 = arith.addf %77, %121 : vector<17x128xf32>
    %c0_49 = arith.constant 0 : index
    %c0_50 = arith.constant 0 : index
    %123 = vector.load %arg11[%c0_49, %c0_50] : memref<1x128xf32, #tpu.memory_space<vmem>>, vector<1x128xf32>
    %124 = vector.broadcast %123 : vector<1x128xf32> to vector<17x128xf32>
    %125 = arith.addf %122, %124 : vector<17x128xf32>
    %126 = arith.truncf %125 : vector<17x128xf32> to vector<17x128xbf16>
    %c0_51 = arith.constant 0 : index
    %c0_52 = arith.constant 0 : index
    %c0_53 = arith.constant 0 : index
    %127 = vector.load %arg12[%c0_51, %c0_52, %c0_53] : memref<1x17x128xbf16, #tpu.memory_space<vmem>>, vector<1x17x128xbf16>
    %128 = vector.shape_cast %127 : vector<1x17x128xbf16> to vector<17x128xbf16>
    %129 = vector.shape_cast %126 : vector<17x128xbf16> to vector<1x17x128xbf16>
    tpu.vector_store %arg12[%c0_51, %c0_52, %c0_53], %129 {strides = array<i32>} : memref<1x17x128xbf16, #tpu.memory_space<vmem>>, vector<1x17x128xbf16>,
    return
  }
  func.func @transform_0(%arg0: i32) -> (i32, i32, i32) {
    %c0_i32 = arith.constant 0 : i32
    %c0_i32_0 = arith.constant 0 : i32
    %c0_i32_1 = arith.constant 0 : i32
    return %arg0, %c0_i32, %c0_i32_0 : i32, i32, i32
  }
  func.func @transform_1(%arg0: i32) -> (i32, i32) {
    %c0_i32 = arith.constant 0 : i32
    %c0_i32_0 = arith.constant 0 : i32
    %c0_i32_1 = arith.constant 0 : i32
    return %c0_i32, %c0_i32_0 : i32, i32
  }
  func.func @transform_2(%arg0: i32) -> (i32, i32) {
    %c0_i32 = arith.constant 0 : i32
    %c0_i32_0 = arith.constant 0 : i32
    %c0_i32_1 = arith.constant 0 : i32
    return %c0_i32, %c0_i32_0 : i32, i32
  }
  func.func @transform_3(%arg0: i32) -> (i32, i32) {
    %c0_i32 = arith.constant 0 : i32
    %c0_i32_0 = arith.constant 0 : i32
    %c0_i32_1 = arith.constant 0 : i32
    return %c0_i32, %c0_i32_0 : i32, i32
  }
  func.func @transform_4(%arg0: i32) -> (i32, i32) {
    %c0_i32 = arith.constant 0 : i32
    %c0_i32_0 = arith.constant 0 : i32
    %c0_i32_1 = arith.constant 0 : i32
    return %c0_i32, %c0_i32_0 : i32, i32
  }
  func.func @transform_5(%arg0: i32) -> (i32, i32) {
    %c0_i32 = arith.constant 0 : i32
    %c0_i32_0 = arith.constant 0 : i32
    %c0_i32_1 = arith.constant 0 : i32
    return %c0_i32, %c0_i32_0 : i32, i32
  }
  func.func @transform_6(%arg0: i32) -> (i32, i32) {
    %c0_i32 = arith.constant 0 : i32
    %c0_i32_0 = arith.constant 0 : i32
    %c0_i32_1 = arith.constant 0 : i32
    return %c0_i32, %c0_i32_0 : i32, i32
  }
  func.func @transform_7(%arg0: i32) -> (i32, i32) {
    %c0_i32 = arith.constant 0 : i32
    %c0_i32_0 = arith.constant 0 : i32
    %c0_i32_1 = arith.constant 0 : i32
    return %c0_i32, %c0_i32_0 : i32, i32
  }
  func.func @transform_8(%arg0: i32) -> (i32, i32) {
    %c0_i32 = arith.constant 0 : i32
    %c0_i32_0 = arith.constant 0 : i32
    %c0_i32_1 = arith.constant 0 : i32
    return %c0_i32, %c0_i32_0 : i32, i32
  }
  func.func @transform_9(%arg0: i32) -> (i32, i32) {
    %c0_i32 = arith.constant 0 : i32
    %c0_i32_0 = arith.constant 0 : i32
    %c0_i32_1 = arith.constant 0 : i32
    return %c0_i32, %c0_i32_0 : i32, i32
  }
  func.func @transform_10(%arg0: i32) -> (i32, i32) {
    %c0_i32 = arith.constant 0 : i32
    %c0_i32_0 = arith.constant 0 : i32
    %c0_i32_1 = arith.constant 0 : i32
    return %c0_i32, %c0_i32_0 : i32, i32
  }
  func.func @transform_11(%arg0: i32) -> (i32, i32, i32) {
    %c0_i32 = arith.constant 0 : i32
    %c0_i32_0 = arith.constant 0 : i32
    %c0_i32_1 = arith.constant 0 : i32
    return %arg0, %c0_i32, %c0_i32_0 : i32, i32, i32
  }
}

</mosaic_0001>

<llo_original>
// kernel: vit_forward.4
$region0: #{vit_forward.4}
  #allocation0 [shape = 'u32[]', space=smem, size = 0x4, offset = 0x4, fixed_abs, tag = 'smem constant byte address 0x4 - core index']
  #allocation1 [shape = 'u32[144,128]{1,0:T(1,128)}', space=vmem, size = 0x12000, scoped, tag = 'internal scratch']
  %s0 = inlined_call_operand.vmem [shape: bf16[2,16,192], index: 0, kind: input, shape index: {}]
  %s1 = inlined_call_operand.vmem [shape: bf16[192,128], index: 1, kind: input, shape index: {}]
  %s2 = inlined_call_operand.vmem [shape: f32[1,128], index: 2, kind: input, shape index: {}]
  %s3 = inlined_call_operand.vmem [shape: f32[16,128], index: 3, kind: input, shape index: {}]
  %s4 = inlined_call_operand.vmem [shape: bf16[2,16,128], index: 4, kind: output, shape index: {}]
  %s5 = sld [smem:[#allocation0]]
  $region49: #{vit_forward.4} parent=0
    _
  %s7 = ssub.s32 1, %s5
  %s8 = scalar_select 0, %s7, %s5
  loop: start=0, step=1, limit=4
  $region2: #{vit_forward.4} parent=0 // loop_pre_header
    _
  $region3: #{vit_forward.4} parent=0 // loop_header
    %s10 = sphi 0, %s14
    %p11 = scmp.ge.s32.totalorder %s10, 4
    %s20 = sphi 0, %s22
    %s23 = sphi 0, %s20
    %s24 = sphi 0, %s23
    %s40 = sphi 0, %s24
    %s44 = sphi 0, %s44
    %s46 = sphi 0, %s44
    %s47 = sphi 0, %s46
    %s61 = sphi 0, %s47
    %s65 = sphi 0, %s65
    %s67 = sphi 0, %s65
    %s68 = sphi 0, %s67
    %s82 = sphi 0, %s68
    %s86 = sphi 0, %s86
    %s88 = sphi 0, %s86
    %s89 = sphi 0, %s88
    %s103 = sphi 0, %s89
    %s109 = sphi 0, %s111
    %s112 = sphi 0, %s109
    %s113 = sphi 0, %s112
    %s129 = sphi 0, %s113
  $region4: #{vit_forward.4} parent=0 // loop_header_branch
    %13 = sbr.rel (%p11) target = $region8
  $region5: #{vit_forward.4} parent=0 // loop_body
    %s15 = ssub.s32 %s10, 1
    %s16 = ssub.s32 %s10, 2
    %s17 = sadd.s32 %s10, 1
    %s18 = ssub.s32 %s10, %s17
    %p19 = scmp.eq.s32.totalorder %s18, 0
    %s21 = sadd.s32 %s20, 1
    %s22 = scalar_select %p19, %s20, %s21
    %p25 = pneg %p19
    %p26 = scmp.eq.s32.totalorder %s10, 1
    %p27 = por %p25, %p26
    %p28 = scmp.ne.s32.totalorder %s20, %s23
    %p29 = scmp.eq.s32.totalorder %s10, 0
    %p30 = por %p28, %p29
    %p31 = scmp.ne.s32.totalorder %s20, %s23
    %p32 = scmp.eq.s32.totalorder %s15, 1
    %p33 = por %p31, %p32
    %p34 = scmp.ne.s32.totalorder %s23, %s24
    %p35 = scmp.eq.s32.totalorder %s15, 0
    %p36 = por %p34, %p35
    %p37 = scmp.ne.s32.totalorder %s23, %s24
    %p38 = scmp.eq.s32.totalorder %s16, 1
    %p39 = por %p37, %p38
    %p41 = scmp.ne.s32.totalorder %s24, %s40
    %p42 = scmp.eq.s32.totalorder %s16, 0
    %p43 = por %p41, %p42
    %s45 = sadd.s32 %s44, 1
    %p48 = scmp.eq.s32.totalorder %s10, 1
    %p49 = scmp.ne.s32.totalorder %s44, %s46
    %p50 = scmp.eq.s32.totalorder %s10, 0
    %p51 = por %p49, %p50
    %p52 = scmp.ne.s32.totalorder %s44, %s46
    %p53 = scmp.eq.s32.totalorder %s15, 1
    %p54 = por %p52, %p53
    %p55 = scmp.ne.s32.totalorder %s46, %s47
    %p56 = scmp.eq.s32.totalorder %s15, 0
    %p57 = por %p55, %p56
    %p58 = scmp.ne.s32.totalorder %s46, %s47
    %p59 = scmp.eq.s32.totalorder %s16, 1
    %p60 = por %p58, %p59
    %p62 = scmp.ne.s32.totalorder %s47, %s61
    %p63 = scmp.eq.s32.totalorder %s16, 0
    %p64 = por %p62, %p63
    %s66 = sadd.s32 %s65, 1
    %p69 = scmp.eq.s32.totalorder %s10, 1
    %p70 = scmp.ne.s32.totalorder %s65, %s67
    %p71 = scmp.eq.s32.totalorder %s10, 0
    %p72 = por %p70, %p71
    %p73 = scmp.ne.s32.totalorder %s65, %s67
    %p74 = scmp.eq.s32.totalorder %s15, 1
    %p75 = por %p73, %p74
    %p76 = scmp.ne.s32.totalorder %s67, %s68
    %p77 = scmp.eq.s32.totalorder %s15, 0
    %p78 = por %p76, %p77
    %p79 = scmp.ne.s32.totalorder %s67, %s68
    %p80 = scmp.eq.s32.totalorder %s16, 1
    %p81 = por %p79, %p80
    %p83 = scmp.ne.s32.totalorder %s68, %s82
    %p84 = scmp.eq.s32.totalorder %s16, 0
    %p85 = por %p83, %p84
    %s87 = sadd.s32 %s86, 1
    %p90 = scmp.eq.s32.totalorder %s10, 1
    %p91 = scmp.ne.s32.totalorder %s86, %s88
    %p92 = scmp.eq.s32.totalorder %s10, 0
    %p93 = por %p91, %p92
    %p94 = scmp.ne.s32.totalorder %s86, %s88
    %p95 = scmp.eq.s32.totalorder %s15, 1
    %p96 = por %p94, %p95
    %p97 = scmp.ne.s32.totalorder %s88, %s89
    %p98 = scmp.eq.s32.totalorder %s15, 0
    %p99 = por %p97, %p98
    %p100 = scmp.ne.s32.totalorder %s88, %s89
    %p101 = scmp.eq.s32.totalorder %s16, 1
    %p102 = por %p100, %p101
    %p104 = scmp.ne.s32.totalorder %s89, %s103
    %p105 = scmp.eq.s32.totalorder %s16, 0
    %p106 = por %p104, %p105
    %s107 = ssub.s32 %s10, %s17
    %p108 = scmp.eq.s32.totalorder %s107, 0
    %s110 = sadd.s32 %s109, 1
    %s111 = scalar_select %p108, %s109, %s110
    %p114 = pneg %p108
    %p115 = scmp.eq.s32.totalorder %s10, 1
    %p116 = por %p114, %p115
    %p117 = scmp.ne.s32.totalorder %s109, %s112
    %p118 = scmp.eq.s32.totalorder %s10, 0
    %p119 = por %p117, %p118
    %p120 = scmp.ne.s32.totalorder %s109, %s112
    %p121 = scmp.eq.s32.totalorder %s15, 1
    %p122 = por %p120, %p121
    %p123 = scmp.ne.s32.totalorder %s112, %s113
    %p124 = scmp.eq.s32.totalorder %s15, 0
    %p125 = por %p123, %p124
    %p126 = scmp.ne.s32.totalorder %s112, %s113
    %p127 = scmp.eq.s32.totalorder %s16, 1
    %p128 = por %p126, %p127
    %p130 = scmp.ne.s32.totalorder %s113, %s129
    %p131 = scmp.eq.s32.totalorder %s16, 0
    %p132 = por %p130, %p131
    %p133 = scmp.le.s32.totalorder 1, %s10
    %p134 = scmp.lt.s32.totalorder %s10, 3
    %p135 = pnand %p133, %p134
    %p136 = pneg %p135
    // Predicated region
    $region9: #{vit_forward.4} parent=5 // pred_check
      _
    $region10: #{vit_forward.4} parent=5 // pred_check_branch
      %138 = sbr.rel (%p135) target = $region12
    $region11: #{vit_forward.4} parent=5 // pred_region
      %s139 = ssub.s32 %s10, 1
      // Predicated region
      $region13: #{vit_forward.4} parent=11 // pred_check
        %p140 = pneg %p57
      $region14: #{vit_forward.4} parent=11 // pred_check_branch
        %142 = sbr.rel (%p140) target = $region16
      $region15: #{vit_forward.4} parent=11 // pred_region
        _
      $region16: #{vit_forward.4} parent=11 // pred_fallthru
        _
      // Predicated region
      $region17: #{vit_forward.4} parent=11 // pred_check
        %p143 = pneg %p78
      $region18: #{vit_forward.4} parent=11 // pred_check_branch
        %145 = sbr.rel (%p143) target = $region20
      $region19: #{vit_forward.4} parent=11 // pred_region
        _
      $region20: #{vit_forward.4} parent=11 // pred_fallthru
        _
      // Predicated region
      $region21: #{vit_forward.4} parent=11 // pred_check
        %p146 = pneg %p99
      $region22: #{vit_forward.4} parent=11 // pred_check_branch
        %148 = sbr.rel (%p146) target = $region24
      $region23: #{vit_forward.4} parent=11 // pred_region
        _
      $region24: #{vit_forward.4} parent=11 // pred_fallthru
        _
    $region12: #{vit_forward.4} parent=5 // pred_fallthru
      _
    %p149 = scmp.lt.s32.totalorder %s10, 2
    // Predicated region
    $region25: #{vit_forward.4} parent=5 // pred_check
      %p150 = pneg %p149
    $region26: #{vit_forward.4} parent=5 // pred_check_branch
      %152 = sbr.rel (%p150) target = $region28
    $region27: #{vit_forward.4} parent=5 // pred_region
      // Predicated region
      $region29: #{vit_forward.4} parent=27 // pred_check
        %p153 = pneg %p30
      $region30: #{vit_forward.4} parent=27 // pred_check_branch
        %155 = sbr.rel (%p153) target = $region32
      $region31: #{vit_forward.4} parent=27 // pred_region
        %p156 = scmp.lt.s32.totalorder %s10, 1
        %s157 = scalar_select %p156, %s10, 1
        %s158 = smul.addr %s157, 4
        %s159 = smul.addr %s158, 4
        %s160 = scalar_lea.vmem %s0, %s159
      $region32: #{vit_forward.4} parent=27 // pred_fallthru
        _
    $region28: #{vit_forward.4} parent=5 // pred_fallthru
      _
    %p161 = scmp.le.s32.totalorder 1, %s10
    %p162 = scmp.lt.s32.totalorder %s10, 3
    %p163 = pnand %p161, %p162
    %p164 = pneg %p163
    // Predicated region
    $region33: #{vit_forward.4} parent=5 // pred_check
      _
    $region34: #{vit_forward.4} parent=5 // pred_check_branch
      %166 = sbr.rel (%p163) target = $region36
    $region35: #{vit_forward.4} parent=5 // pred_region
      %s167 = ssub.s32 %s10, 1
      %p168 = scmp.lt.s32.totalorder %s15, 1
      %s169 = scalar_select %p168, %s15, 1
      %s170 = smul.addr %s169, 4
      %s171 = smul.addr %s170, 4
      %s172 = scalar_lea.vmem %s0, %s171
      %p173 = pneg %p36
      %p174 = pneg %p33
      %p175 = pneg %p57
      %p176 = pneg %p54
      %p177 = pneg %p78
      %p178 = pneg %p75
      %p179 = pneg %p99
      %p180 = pneg %p96
      %p181 = pneg %p125
      %p182 = pneg %p122
      %p183 = scmp.lt.s32.totalorder %s15, 1
      %s184 = scalar_select %p183, %s15, 1
      %s185 = smul.addr %s184, 2
      %s186 = smul.addr %s185, 4
      %s187 = scalar_lea.vmem %s4, %s186
      %p188 = scmp.lt.s32.totalorder %s15, 1
      %s189 = scalar_select %p188, %s15, 1
      %s190 = smul.addr %s189, 4
      %s191 = smul.addr %s190, 4
      %s192 = scalar_lea.vmem %s0, %s191
      %p193 = scmp.lt.s32.totalorder %s15, 1
      %s194 = scalar_select %p193, %s15, 1
      %s195 = smul.addr %s194, 2
      %s196 = smul.addr %s195, 4
      %s197 = scalar_lea.vmem %s4, %s196
      %v199 = vld [vmem:[%s192] sm:$0xff]
      %v200 = vld [vmem:[%s192 + $0x8] sm:$0xff]
      %v201 = vld [vmem:[%s1] sm:$0xf]
      %v202 = vld [vmem:[%s1 + $0x4] sm:$0xf]
      %v203 = vld [vmem:[%s1 + $0x8] sm:$0xf]
      %v204 = vld [vmem:[%s1 + $0xc] sm:$0xf]
      %v205 = vld [vmem:[%s1 + $0x10] sm:$0xf]
      %v206 = vld [vmem:[%s1 + $0x14] sm:$0xf]
      %v207 = vld [vmem:[%s1 + $0x18] sm:$0xf]
      %v208 = vld [vmem:[%s1 + $0x1c] sm:$0xf]
      %v209 = vld [vmem:[%s1 + $0x20] sm:$0xf]
      %v210 = vld [vmem:[%s1 + $0x24] sm:$0xf]
      %v211 = vld [vmem:[%s1 + $0x28] sm:$0xf]
      %v212 = vld [vmem:[%s1 + $0x2c] sm:$0xf]
      %v213 = vld [vmem:[%s1 + $0x30] sm:$0xf]
      %v214 = vld [vmem:[%s1 + $0x34] sm:$0xf]
      %v215 = vld [vmem:[%s1 + $0x38] sm:$0xf]
      %v216 = vld [vmem:[%s1 + $0x3c] sm:$0xf]
      %v217 = vld [vmem:[%s1 + $0x40] sm:$0xf]
      %v218 = vld [vmem:[%s1 + $0x44] sm:$0xf]
      %v219 = vld [vmem:[%s1 + $0x48] sm:$0xf]
      %v220 = vld [vmem:[%s1 + $0x4c] sm:$0xf]
      %v221 = vld [vmem:[%s1 + $0x50] sm:$0xf]
      %v222 = vld [vmem:[%s1 + $0x54] sm:$0xf]
      %v223 = vld [vmem:[%s1 + $0x58] sm:$0xf]
      %v224 = vld [vmem:[%s1 + $0x5c] sm:$0xf]
      %v225 = vld [vmem:[%s2] sm:$0x1]
      %v227 = vlaneseq
      %v228 = vshrl.u32 %v227, 7
      %v229 = vsub.s32 0, %v228
      %v230 = vrot.slane %v225, %v229
      %v234 = vunpack.c.l.b16 %v199
      %v235 = vunpack.c.h.b16 %v199
      %v236 = vunpack.c.l.b16 %v200
      %v237 = vunpack.c.h.b16 %v200
      %v238 = vpack.c.b16 %v236, %v234
      %v239 = vpack.c.b16 %v237, %v235
      %v265 = vunpack.c.l.b16 %v201
      %v266 = vunpack.c.l.b16 %v202
      %v267 = vunpack.c.l.b16 %v203
      %v268 = vunpack.c.l.b16 %v204
      %v269 = vunpack.c.l.b16 %v205
      %v270 = vunpack.c.l.b16 %v206
      %v271 = vunpack.c.l.b16 %v207
      %v272 = vunpack.c.l.b16 %v208
      %v273 = vunpack.c.l.b16 %v209
      %v274 = vunpack.c.l.b16 %v210
      %v275 = vunpack.c.l.b16 %v211
      %v276 = vunpack.c.l.b16 %v212
      %v277 = vunpack.c.l.b16 %v213
      %v278 = vunpack.c.l.b16 %v214
      %v279 = vunpack.c.l.b16 %v215
      %v280 = vunpack.c.l.b16 %v216
      %v281 = vunpack.c.l.b16 %v217
      %v282 = vunpack.c.l.b16 %v218
      %v283 = vunpack.c.l.b16 %v219
      %v284 = vunpack.c.l.b16 %v220
      %v285 = vunpack.c.l.b16 %v221
      %v286 = vunpack.c.l.b16 %v222
      %v287 = vunpack.c.l.b16 %v223
      %v288 = vunpack.c.l.b16 %v224
      %v289 = vpack.c.b16 %v266, %v265
      %v290 = vpack.c.b16 %v268, %v267
      %v291 = vpack.c.b16 %v270, %v269
      %v292 = vpack.c.b16 %v272, %v271
      %v293 = vpack.c.b16 %v274, %v273
      %v294 = vpack.c.b16 %v276, %v275
      %v295 = vpack.c.b16 %v278, %v277
      %v296 = vpack.c.b16 %v280, %v279
      %v297 = vpack.c.b16 %v282, %v281
      %v298 = vpack.c.b16 %v284, %v283
      %v299 = vpack.c.b16 %v286, %v285
      %v300 = vpack.c.b16 %v288, %v287
      %vm313 = vcmask 523264
      %v315 = vsel %vm313, %v239, 0
      %317 = vmatprep.subr.bf16.mxu0 0
      %318 = vmatpush1.bf16.msra.mxu0 %v296
      %319 = vmatprep.subr.bf16.mxu0 0
      %320 = vmatpush1.bf16.msra.mxu0 %v295
      %321 = vmatprep.subr.bf16.mxu0 0
      %322 = vmatpush1.bf16.msra.mxu0 %v294
      %323 = vmatprep.subr.bf16.mxu0 0
      %324 = vmatpush1.bf16.msra.mxu0 %v293
      %325 = vmatprep.subr.bf16.mxu0 0
      %326 = vmatpush1.bf16.msra.mxu0 %v292
      %327 = vmatprep.subr.bf16.mxu0 0
      %328 = vmatpush1.bf16.msra.mxu0 %v291
      %329 = vmatprep.subr.bf16.mxu0 0
      %330 = vmatpush1.bf16.msra.mxu0 %v290
      %331 = vmatprep.subr.bf16.mxu0 0
      %332 = vmatpush1.bf16.msra.mxu0 %v289
      %333 = vmatprep.subr.bf16.mxu0 0
      %334 = vmatpush2.bf16.msra.mxu0 0
      %335 = vmatprep.subr.bf16.mxu0 0
      %336 = vmatpush2.bf16.msra.mxu0 0
      %337 = vmatprep.subr.bf16.mxu0 0
      %338 = vmatpush2.bf16.msra.mxu0 0
      %339 = vmatprep.subr.bf16.mxu0 0
      %340 = vmatpush2.bf16.msra.mxu0 0
      %341 = vmatprep.subr.bf16.mxu0 0
      %342 = vmatpush2.bf16.msra.mxu0 %v300
      %343 = vmatprep.subr.bf16.mxu0 0
      %344 = vmatpush2.bf16.msra.mxu0 %v299
      %345 = vmatprep.subr.bf16.mxu0 0
      %346 = vmatpush2.bf16.msra.mxu0 %v298
      %347 = vmatprep.subr.bf16.mxu0 0
      %348 = vmatpush2.bf16.msra.mxu0 %v297
      %349 = vmatprep.mubr.bf16.mxu0 %v315
      %350 = vmatmul.mubr.bf16.gmra.mxu0 %v238
      %v351 = vpop.f32.mrf.mxu0
      %v352 = vadd.f32 %v230, %v351
      %v353 = vpop.f32.mrf.mxu0
      %v354 = vpop.f32.mrf.mxu0
      %v355 = vadd.f32 %v230, %v354
      %v356 = vpop.f32.mrf.mxu0
      %357 = vdwg.mxu0
      %v358 = vld [vmem:[%s3] sm:$0xff]
      %v359 = vld [vmem:[%s3 + $0x8] sm:$0xff]
      %v360 = vadd.f32 %v352, %v358
      %v361 = vadd.f32 %v355, %v359
      %v362 = vpack.c.bf16 %v361, %v360
      %v364 = vunpack.c.l.b16 %v362
      %v365 = vunpack.c.h.b16 %v362
      %v366 = vpack.c.b16 %v364, %v364
      %v367 = vpack.c.b16 %v365, %v365
      %370 = vst [vmem:[%s197] sm:$0xf] %v366
      %371 = vst [vmem:[%s197 + $0x4] sm:$0xf] %v367
      %p372 = scmp.lt.s32.totalorder %s15, 1
      %s373 = scalar_select %p372, %s15, 1
      %s374 = smul.addr %s373, 2
      %s375 = smul.addr %s374, 4
      %s376 = scalar_lea.vmem %s4, %s375
      // Predicated region
      $region37: #{vit_forward.4} parent=35 // pred_check
        %p377 = pneg %p122
      $region38: #{vit_forward.4} parent=35 // pred_check_branch
        %379 = sbr.rel (%p377) target = $region40
      $region39: #{vit_forward.4} parent=35 // pred_region
        _
      $region40: #{vit_forward.4} parent=35 // pred_fallthru
        _
    $region36: #{vit_forward.4} parent=5 // pred_fallthru
      _
    %p380 = scmp.le.s32.totalorder 2, %s10
    // Predicated region
    $region41: #{vit_forward.4} parent=5 // pred_check
      %p381 = pneg %p380
    $region42: #{vit_forward.4} parent=5 // pred_check_branch
      %383 = sbr.rel (%p381) target = $region44
    $region43: #{vit_forward.4} parent=5 // pred_region
      %s384 = ssub.s32 %s10, 2
      // Predicated region
      $region45: #{vit_forward.4} parent=43 // pred_check
        %p385 = pneg %p128
      $region46: #{vit_forward.4} parent=43 // pred_check_branch
        %387 = sbr.rel (%p385) target = $region48
      $region47: #{vit_forward.4} parent=43 // pred_region
        %p388 = scmp.lt.s32.totalorder %s16, 1
        %s389 = scalar_select %p388, %s16, 1
        %s390 = smul.addr %s389, 2
        %s391 = smul.addr %s390, 4
        %s392 = scalar_lea.vmem %s4, %s391
      $region48: #{vit_forward.4} parent=43 // pred_fallthru
        _
    $region44: #{vit_forward.4} parent=5 // pred_fallthru
      _
  $region6: #{vit_forward.4} parent=0 // loop_footer
    %s14 = sadd.s32 1, %s10
  $region7: #{vit_forward.4} parent=0 // loop_footer_branch
    %9 = sbr.rel target = $region3
  $region8: #{vit_forward.4} parent=0 // loop_exit
    _

// kernel: vit_forward.7
$region0: #{vit_forward.7}
  #allocation0 [shape = 'u32[]', space=smem, size = 0x4, offset = 0x4, fixed_abs, tag = 'smem constant byte address 0x4 - core index']
  #allocation1 [shape = 'u32[144,128]{1,0:T(1,128)}', space=vmem, size = 0x12000, scoped, tag = 'internal scratch']
  %s0 = inlined_call_operand.vmem [shape: bf16[2,128], index: 0, kind: input, shape index: {}]
  %s1 = inlined_call_operand.vmem [shape: f32[1,128], index: 1, kind: input, shape index: {}]
  %s2 = inlined_call_operand.vmem [shape: f32[1,128], index: 2, kind: input, shape index: {}]
  %s3 = inlined_call_operand.vmem [shape: bf16[128,10], index: 3, kind: input, shape index: {}]
  %s4 = inlined_call_operand.vmem [shape: f32[1,10], index: 4, kind: input, shape index: {}]
  %s5 = inlined_call_operand.hbm [shape: f32[2,10], index: 5, kind: output, shape index: {}]
  %s6 = sld [smem:[#allocation0]]
  $region30: #{vit_forward.7} parent=0
    _
  %s8 = ssub.s32 1, %s6
  %s9 = scalar_select 0, %s8, %s6
  $region1: #{vit_forward.7} parent=0
    #allocation2 [shape = 'u8[1024]{0}', space=vmem, size = 0x400, scoped, tag = 'output window, operand 0, single buffered']
    #allocation3 [shape = 's32[1]{0}', space=sflag, size = 0x4, scoped, tag = 'scoped memory for vit_forward.7']
    %10 = vsyncpa [#allocation3], 0
    // Predicated region
    $region2: #{vit_forward.7} parent=1 // pred_check
      _
    $region3: #{vit_forward.7} parent=1 // pred_check_branch
      %12 = sbr.rel (0) target = $region5
    $region4: #{vit_forward.7} parent=1 // pred_region
      _
    $region5: #{vit_forward.7} parent=1 // pred_fallthru
      _
    // Predicated region
    $region6: #{vit_forward.7} parent=1 // pred_check
      _
    $region7: #{vit_forward.7} parent=1 // pred_check_branch
      %14 = sbr.rel (0) target = $region9
    $region8: #{vit_forward.7} parent=1 // pred_region
      _
    $region9: #{vit_forward.7} parent=1 // pred_fallthru
      _
    // Predicated region
    $region10: #{vit_forward.7} parent=1 // pred_check
      _
    $region11: #{vit_forward.7} parent=1 // pred_check_branch
      %16 = sbr.rel (0) target = $region13
    $region12: #{vit_forward.7} parent=1 // pred_region
      _
    $region13: #{vit_forward.7} parent=1 // pred_fallthru
      _
    // Predicated region
    $region14: #{vit_forward.7} parent=1 // pred_check
      _
    $region15: #{vit_forward.7} parent=1 // pred_check_branch
      %18 = sbr.rel (0) target = $region17
    $region16: #{vit_forward.7} parent=1 // pred_region
      _
    $region17: #{vit_forward.7} parent=1 // pred_fallthru
      _
    // Predicated region
    $region18: #{vit_forward.7} parent=1 // pred_check
      _
    $region19: #{vit_forward.7} parent=1 // pred_check_branch
      %20 = sbr.rel (0) target = $region21
    $region20: #{vit_forward.7} parent=1 // pred_region
      _
    $region21: #{vit_forward.7} parent=1 // pred_fallthru
      _
    %v22 = vld [vmem:[%s0] sm:$0x1]
    %v23 = vunpack.c.l.bf16 %v22
    %vm24 = vcmask 1041408
    %v25 = vsel %vm24, %v23, 0.0
    %26 = vadd.xlane.f32.xlu0 %v25
    %v27 = vpop.xlane.xlu0 %26
    %v28 = vrcp.pop 128.0
    %v29 = vmul.f32 %v27, %v28
    %v30 = vsub.f32 %v23, %v29
    %v31 = vmul.f32 %v30, %v30
    %v32 = vsel %vm24, %v31, 0.0
    %33 = vadd.xlane.f32.xlu0 %v32
    %v34 = vpop.xlane.xlu0 %33
    %v35 = vmul.f32 %v34, %v28
    %v36 = vadd.f32 %v35, 1e-05
    %v37 = vrsqrt.pop %v36
    %v38 = vmul.f32 %v30, %v37
    %v39 = vld [vmem:[%s1] sm:$0x1]
    %v41 = vlaneseq
    %v42 = vshrl.u32 %v41, 7
    %v43 = vsub.s32 0, %v42
    %v44 = vrot.slane %v39, %v43
    %v46 = vmul.f32 %v38, %v44
    %v47 = vld [vmem:[%s2] sm:$0x1]
    %v49 = vlaneseq
    %v50 = vshrl.u32 %v49, 7
    %v51 = vsub.s32 0, %v50
    %v52 = vrot.slane %v47, %v51
    %v54 = vadd.f32 %v46, %v52
    %v55 = vpack.c.bf16 %v54, %v54
    %v56 = vld [vmem:[%s3] sm:$0xf]
    %v57 = vld [vmem:[%s3 + $0x4] sm:$0xf]
    %v58 = vld [vmem:[%s3 + $0x8] sm:$0xf]
    %v59 = vld [vmem:[%s3 + $0xc] sm:$0xf]
    %v60 = vld [vmem:[%s3 + $0x10] sm:$0xf]
    %v61 = vld [vmem:[%s3 + $0x14] sm:$0xf]
    %v62 = vld [vmem:[%s3 + $0x18] sm:$0xf]
    %v63 = vld [vmem:[%s3 + $0x1c] sm:$0xf]
    %v64 = vld [vmem:[%s3 + $0x20] sm:$0xf]
    %v65 = vld [vmem:[%s3 + $0x24] sm:$0xf]
    %v66 = vld [vmem:[%s3 + $0x28] sm:$0xf]
    %v67 = vld [vmem:[%s3 + $0x2c] sm:$0xf]
    %v68 = vld [vmem:[%s3 + $0x30] sm:$0xf]
    %v69 = vld [vmem:[%s3 + $0x34] sm:$0xf]
    %v70 = vld [vmem:[%s3 + $0x38] sm:$0xf]
    %v71 = vld [vmem:[%s3 + $0x3c] sm:$0xf]
    %v72 = vld [vmem:[%s4] sm:$0x1]
    %v74 = vlaneseq
    %v75 = vshrl.u32 %v74, 7
    %v76 = vsub.s32 0, %v75
    %v77 = vrot.slane %v72, %v76
    %v95 = vunpack.c.l.b16 %v56
    %v96 = vunpack.c.l.b16 %v57
    %v97 = vunpack.c.l.b16 %v58
    %v98 = vunpack.c.l.b16 %v59
    %v99 = vunpack.c.l.b16 %v60
    %v100 = vunpack.c.l.b16 %v61
    %v101 = vunpack.c.l.b16 %v62
    %v102 = vunpack.c.l.b16 %v63
    %v103 = vunpack.c.l.b16 %v64
    %v104 = vunpack.c.l.b16 %v65
    %v105 = vunpack.c.l.b16 %v66
    %v106 = vunpack.c.l.b16 %v67
    %v107 = vunpack.c.l.b16 %v68
    %v108 = vunpack.c.l.b16 %v69
    %v109 = vunpack.c.l.b16 %v70
    %v110 = vunpack.c.l.b16 %v71
    %v111 = vpack.c.b16 %v96, %v95
    %v112 = vpack.c.b16 %v98, %v97
    %v113 = vpack.c.b16 %v100, %v99
    %v114 = vpack.c.b16 %v102, %v101
    %v115 = vpack.c.b16 %v104, %v103
    %v116 = vpack.c.b16 %v106, %v105
    %v117 = vpack.c.b16 %v108, %v107
    %v118 = vpack.c.b16 %v110, %v109
    %127 = vmatprep.subr.bf16.mxu0 0
    %128 = vmatpush1.bf16.msra.mxu0 %v118
    %129 = vmatprep.subr.bf16.mxu0 0
    %130 = vmatpush1.bf16.msra.mxu0 %v117
    %131 = vmatprep.subr.bf16.mxu0 0
    %132 = vmatpush1.bf16.msra.mxu0 %v116
    %133 = vmatprep.subr.bf16.mxu0 0
    %134 = vmatpush1.bf16.msra.mxu0 %v115
    %135 = vmatprep.subr.bf16.mxu0 0
    %136 = vmatpush1.bf16.msra.mxu0 %v114
    %137 = vmatprep.subr.bf16.mxu0 0
    %138 = vmatpush1.bf16.msra.mxu0 %v113
    %139 = vmatprep.subr.bf16.mxu0 0
    %140 = vmatpush1.bf16.msra.mxu0 %v112
    %141 = vmatprep.subr.bf16.mxu0 0
    %142 = vmatpush1.bf16.msra.mxu0 %v111
    %143 = vmatprep.subr.bf16.mxu0 0
    %144 = vmatpush2.bf16.msra.mxu0 0
    %145 = vmatprep.subr.bf16.mxu0 0
    %146 = vmatpush2.bf16.msra.mxu0 0
    %147 = vmatprep.subr.bf16.mxu0 0
    %148 = vmatpush2.bf16.msra.mxu0 0
    %149 = vmatprep.subr.bf16.mxu0 0
    %150 = vmatpush2.bf16.msra.mxu0 0
    %151 = vmatprep.subr.bf16.mxu0 0
    %152 = vmatpush2.bf16.msra.mxu0 0
    %153 = vmatprep.subr.bf16.mxu0 0
    %154 = vmatpush2.bf16.msra.mxu0 0
    %155 = vmatprep.subr.bf16.mxu0 0
    %156 = vmatpush2.bf16.msra.mxu0 0
    %157 = vmatprep.subr.bf16.mxu0 0
    %158 = vmatpush2.bf16.msra.mxu0 0
    %159 = vmatprep.mubr.bf16.mxu0 0
    %160 = vmatmul.mubr.bf16.gmra.mxu0 %v55
    %v161 = vpop.f32.mrf.mxu0
    %v162 = vadd.f32 %v77, %v161
    %v163 = vpop.f32.mrf.mxu0
    %v164 = vpop.f32.mrf.mxu0
    %v165 = vpop.f32.mrf.mxu0
    %166 = vdwg.mxu0
    %vm167 = vcmask 74752
    %168 = vst.msk [vmem:[#allocation2] sm:$0x3] %vm167, %v162
    // Predicated region
    $region22: #{vit_forward.7} parent=1 // pred_check
      _
    $region23: #{vit_forward.7} parent=1 // pred_check_branch
      %170 = sbr.rel (0) target = $region25
    $region24: #{vit_forward.7} parent=1 // pred_region
      %s172 = ssub.s32 32, 32
      %173 = vsyncadd [#allocation3], %s172
      %s175 = sshll.u32 [#allocation2], 4
      %s176 = int_to_ptr.vmem [resolvable:$true] %s175
      %178 = dma.vmem_to_hbm [thread:$0]  %s176, 32, %s5, [#allocation3]
    $region25: #{vit_forward.7} parent=1 // pred_fallthru
      _
    // Predicated region
    $region26: #{vit_forward.7} parent=1 // pred_check
      _
    $region27: #{vit_forward.7} parent=1 // pred_check_branch
      %180 = sbr.rel (0) target = $region29
    $region28: #{vit_forward.7} parent=1 // pred_region
      %181 = dma.done [#allocation3], 32
    $region29: #{vit_forward.7} parent=1 // pred_fallthru
      _
    %182 = vsyncpa [#allocation3], 1

// kernel: vit_forward.5
$region0: #{vit_forward.5}
  #allocation0 [shape = 'u32[]', space=smem, size = 0x4, offset = 0x4, fixed_abs, tag = 'smem constant byte address 0x4 - core index']
  #allocation1 [shape = 'u32[144,128]{1,0:T(1,128)}', space=vmem, size = 0x12000, scoped, tag = 'internal scratch']
  %s0 = inlined_call_operand.vmem [shape: bf16[2,17,128], index: 0, kind: input, shape index: {}]
  %s1 = inlined_call_operand.vmem [shape: f32[1,128], index: 1, kind: input, shape index: {}]
  %s2 = inlined_call_operand.vmem [shape: f32[1,128], index: 2, kind: input, shape index: {}]
  %s3 = inlined_call_operand.vmem [shape: bf16[128,384], index: 3, kind: input, shape index: {}]
  %s4 = inlined_call_operand.vmem [shape: bf16[128,128], index: 4, kind: input, shape index: {}]
  %s5 = inlined_call_operand.vmem [shape: f32[1,128], index: 5, kind: input, shape index: {}]
  %s6 = inlined_call_operand.vmem [shape: f32[1,128], index: 6, kind: input, shape index: {}]
  %s7 = inlined_call_operand.vmem [shape: bf16[128,256], index: 7, kind: input, shape index: {}]
  %s8 = inlined_call_operand.vmem [shape: f32[1,256], index: 8, kind: input, shape index: {}]
  %s9 = inlined_call_operand.vmem [shape: bf16[256,128], index: 9, kind: input, shape index: {}]
  %s10 = inlined_call_operand.vmem [shape: f32[1,128], index: 10, kind: input, shape index: {}]
  %s11 = inlined_call_operand.vmem [shape: bf16[2,17,128], index: 11, kind: output, shape index: {}]
  %s12 = sld [smem:[#allocation0]]
  $region77: #{vit_forward.5} parent=0
    _
  %s14 = ssub.s32 1, %s12
  %s15 = scalar_select 0, %s14, %s12
  loop: start=0, step=1, limit=4
  $region2: #{vit_forward.5} parent=0 // loop_pre_header
    _
  $region3: #{vit_forward.5} parent=0 // loop_header
    %s17 = sphi 0, %s21
    %p18 = scmp.ge.s32.totalorder %s17, 4
    %s27 = sphi 0, %s29
    %s30 = sphi 0, %s27
    %s31 = sphi 0, %s30
    %s47 = sphi 0, %s31
    %s51 = sphi 0, %s51
    %s53 = sphi 0, %s51
    %s54 = sphi 0, %s53
    %s68 = sphi 0, %s54
    %s72 = sphi 0, %s72
    %s74 = sphi 0, %s72
    %s75 = sphi 0, %s74
    %s89 = sphi 0, %s75
    %s93 = sphi 0, %s93
    %s95 = sphi 0, %s93
    %s96 = sphi 0, %s95
    %s110 = sphi 0, %s96
    %s114 = sphi 0, %s114
    %s116 = sphi 0, %s114
    %s117 = sphi 0, %s116
    %s131 = sphi 0, %s117
    %s135 = sphi 0, %s135
    %s137 = sphi 0, %s135
    %s138 = sphi 0, %s137
    %s152 = sphi 0, %s138
    %s156 = sphi 0, %s156
    %s158 = sphi 0, %s156
    %s159 = sphi 0, %s158
    %s173 = sphi 0, %s159
    %s177 = sphi 0, %s177
    %s179 = sphi 0, %s177
    %s180 = sphi 0, %s179
    %s194 = sphi 0, %s180
    %s198 = sphi 0, %s198
    %s200 = sphi 0, %s198
    %s201 = sphi 0, %s200
    %s215 = sphi 0, %s201
    %s219 = sphi 0, %s219
    %s221 = sphi 0, %s219
    %s222 = sphi 0, %s221
    %s236 = sphi 0, %s222
    %s240 = sphi 0, %s240
    %s242 = sphi 0, %s240
    %s243 = sphi 0, %s242
    %s257 = sphi 0, %s243
    %s263 = sphi 0, %s265
    %s266 = sphi 0, %s263
    %s267 = sphi 0, %s266
    %s283 = sphi 0, %s267
  $region4: #{vit_forward.5} parent=0 // loop_header_branch
    %20 = sbr.rel (%p18) target = $region8
  $region5: #{vit_forward.5} parent=0 // loop_body
    %s22 = ssub.s32 %s17, 1
    %s23 = ssub.s32 %s17, 2
    %s24 = sadd.s32 %s17, 1
    %s25 = ssub.s32 %s17, %s24
    %p26 = scmp.eq.s32.totalorder %s25, 0
    %s28 = sadd.s32 %s27, 1
    %s29 = scalar_select %p26, %s27, %s28
    %p32 = pneg %p26
    %p33 = scmp.eq.s32.totalorder %s17, 1
    %p34 = por %p32, %p33
    %p35 = scmp.ne.s32.totalorder %s27, %s30
    %p36 = scmp.eq.s32.totalorder %s17, 0
    %p37 = por %p35, %p36
    %p38 = scmp.ne.s32.totalorder %s27, %s30
    %p39 = scmp.eq.s32.totalorder %s22, 1
    %p40 = por %p38, %p39
    %p41 = scmp.ne.s32.totalorder %s30, %s31
    %p42 = scmp.eq.s32.totalorder %s22, 0
    %p43 = por %p41, %p42
    %p44 = scmp.ne.s32.totalorder %s30, %s31
    %p45 = scmp.eq.s32.totalorder %s23, 1
    %p46 = por %p44, %p45
    %p48 = scmp.ne.s32.totalorder %s31, %s47
    %p49 = scmp.eq.s32.totalorder %s23, 0
    %p50 = por %p48, %p49
    %s52 = sadd.s32 %s51, 1
    %p55 = scmp.eq.s32.totalorder %s17, 1
    %p56 = scmp.ne.s32.totalorder %s51, %s53
    %p57 = scmp.eq.s32.totalorder %s17, 0
    %p58 = por %p56, %p57
    %p59 = scmp.ne.s32.totalorder %s51, %s53
    %p60 = scmp.eq.s32.totalorder %s22, 1
    %p61 = por %p59, %p60
    %p62 = scmp.ne.s32.totalorder %s53, %s54
    %p63 = scmp.eq.s32.totalorder %s22, 0
    %p64 = por %p62, %p63
    %p65 = scmp.ne.s32.totalorder %s53, %s54
    %p66 = scmp.eq.s32.totalorder %s23, 1
    %p67 = por %p65, %p66
    %p69 = scmp.ne.s32.totalorder %s54, %s68
    %p70 = scmp.eq.s32.totalorder %s23, 0
    %p71 = por %p69, %p70
    %s73 = sadd.s32 %s72, 1
    %p76 = scmp.eq.s32.totalorder %s17, 1
    %p77 = scmp.ne.s32.totalorder %s72, %s74
    %p78 = scmp.eq.s32.totalorder %s17, 0
    %p79 = por %p77, %p78
    %p80 = scmp.ne.s32.totalorder %s72, %s74
    %p81 = scmp.eq.s32.totalorder %s22, 1
    %p82 = por %p80, %p81
    %p83 = scmp.ne.s32.totalorder %s74, %s75
    %p84 = scmp.eq.s32.totalorder %s22, 0
    %p85 = por %p83, %p84
    %p86 = scmp.ne.s32.totalorder %s74, %s75
    %p87 = scmp.eq.s32.totalorder %s23, 1
    %p88 = por %p86, %p87
    %p90 = scmp.ne.s32.totalorder %s75, %s89
    %p91 = scmp.eq.s32.totalorder %s23, 0
    %p92 = por %p90, %p91
    %s94 = sadd.s32 %s93, 1
    %p97 = scmp.eq.s32.totalorder %s17, 1
    %p98 = scmp.ne.s32.totalorder %s93, %s95
    %p99 = scmp.eq.s32.totalorder %s17, 0
    %p100 = por %p98, %p99
    %p101 = scmp.ne.s32.totalorder %s93, %s95
    %p102 = scmp.eq.s32.totalorder %s22, 1
    %p103 = por %p101, %p102
    %p104 = scmp.ne.s32.totalorder %s95, %s96
    %p105 = scmp.eq.s32.totalorder %s22, 0
    %p106 = por %p104, %p105
    %p107 = scmp.ne.s32.totalorder %s95, %s96
    %p108 = scmp.eq.s32.totalorder %s23, 1
    %p109 = por %p107, %p108
    %p111 = scmp.ne.s32.totalorder %s96, %s110
    %p112 = scmp.eq.s32.totalorder %s23, 0
    %p113 = por %p111, %p112
    %s115 = sadd.s32 %s114, 1
    %p118 = scmp.eq.s32.totalorder %s17, 1
    %p119 = scmp.ne.s32.totalorder %s114, %s116
    %p120 = scmp.eq.s32.totalorder %s17, 0
    %p121 = por %p119, %p120
    %p122 = scmp.ne.s32.totalorder %s114, %s116
    %p123 = scmp.eq.s32.totalorder %s22, 1
    %p124 = por %p122, %p123
    %p125 = scmp.ne.s32.totalorder %s116, %s117
    %p126 = scmp.eq.s32.totalorder %s22, 0
    %p127 = por %p125, %p126
    %p128 = scmp.ne.s32.totalorder %s116, %s117
    %p129 = scmp.eq.s32.totalorder %s23, 1
    %p130 = por %p128, %p129
    %p132 = scmp.ne.s32.totalorder %s117, %s131
    %p133 = scmp.eq.s32.totalorder %s23, 0
    %p134 = por %p132, %p133
    %s136 = sadd.s32 %s135, 1
    %p139 = scmp.eq.s32.totalorder %s17, 1
    %p140 = scmp.ne.s32.totalorder %s135, %s137
    %p141 = scmp.eq.s32.totalorder %s17, 0
    %p142 = por %p140, %p141
    %p143 = scmp.ne.s32.totalorder %s135, %s137
    %p144 = scmp.eq.s32.totalorder %s22, 1
    %p145 = por %p143, %p144
    %p146 = scmp.ne.s32.totalorder %s137, %s138
    %p147 = scmp.eq.s32.totalorder %s22, 0
    %p148 = por %p146, %p147
    %p149 = scmp.ne.s32.totalorder %s137, %s138
    %p150 = scmp.eq.s32.totalorder %s23, 1
    %p151 = por %p149, %p150
    %p153 = scmp.ne.s32.totalorder %s138, %s152
    %p154 = scmp.eq.s32.totalorder %s23, 0
    %p155 = por %p153, %p154
    %s157 = sadd.s32 %s156, 1
    %p160 = scmp.eq.s32.totalorder %s17, 1
    %p161 = scmp.ne.s32.totalorder %s156, %s158
    %p162 = scmp.eq.s32.totalorder %s17, 0
    %p163 = por %p161, %p162
    %p164 = scmp.ne.s32.totalorder %s156, %s158
    %p165 = scmp.eq.s32.totalorder %s22, 1
    %p166 = por %p164, %p165
    %p167 = scmp.ne.s32.totalorder %s158, %s159
    %p168 = scmp.eq.s32.totalorder %s22, 0
    %p169 = por %p167, %p168
    %p170 = scmp.ne.s32.totalorder %s158, %s159
    %p171 = scmp.eq.s32.totalorder %s23, 1
    %p172 = por %p170, %p171
    %p174 = scmp.ne.s32.totalorder %s159, %s173
    %p175 = scmp.eq.s32.totalorder %s23, 0
    %p176 = por %p174, %p175
    %s178 = sadd.s32 %s177, 1
    %p181 = scmp.eq.s32.totalorder %s17, 1
    %p182 = scmp.ne.s32.totalorder %s177, %s179
    %p183 = scmp.eq.s32.totalorder %s17, 0
    %p184 = por %p182, %p183
    %p185 = scmp.ne.s32.totalorder %s177, %s179
    %p186 = scmp.eq.s32.totalorder %s22, 1
    %p187 = por %p185, %p186
    %p188 = scmp.ne.s32.totalorder %s179, %s180
    %p189 = scmp.eq.s32.totalorder %s22, 0
    %p190 = por %p188, %p189
    %p191 = scmp.ne.s32.totalorder %s179, %s180
    %p192 = scmp.eq.s32.totalorder %s23, 1
    %p193 = por %p191, %p192
    %p195 = scmp.ne.s32.totalorder %s180, %s194
    %p196 = scmp.eq.s32.totalorder %s23, 0
    %p197 = por %p195, %p196
    %s199 = sadd.s32 %s198, 1
    %p202 = scmp.eq.s32.totalorder %s17, 1
    %p203 = scmp.ne.s32.totalorder %s198, %s200
    %p204 = scmp.eq.s32.totalorder %s17, 0
    %p205 = por %p203, %p204
    %p206 = scmp.ne.s32.totalorder %s198, %s200
    %p207 = scmp.eq.s32.totalorder %s22, 1
    %p208 = por %p206, %p207
    %p209 = scmp.ne.s32.totalorder %s200, %s201
    %p210 = scmp.eq.s32.totalorder %s22, 0
    %p211 = por %p209, %p210
    %p212 = scmp.ne.s32.totalorder %s200, %s201
    %p213 = scmp.eq.s32.totalorder %s23, 1
    %p214 = por %p212, %p213
    %p216 = scmp.ne.s32.totalorder %s201, %s215
    %p217 = scmp.eq.s32.totalorder %s23, 0
    %p218 = por %p216, %p217
    %s220 = sadd.s32 %s219, 1
    %p223 = scmp.eq.s32.totalorder %s17, 1
    %p224 = scmp.ne.s32.totalorder %s219, %s221
    %p225 = scmp.eq.s32.totalorder %s17, 0
    %p226 = por %p224, %p225
    %p227 = scmp.ne.s32.totalorder %s219, %s221
    %p228 = scmp.eq.s32.totalorder %s22, 1
    %p229 = por %p227, %p228
    %p230 = scmp.ne.s32.totalorder %s221, %s222
    %p231 = scmp.eq.s32.totalorder %s22, 0
    %p232 = por %p230, %p231
    %p233 = scmp.ne.s32.totalorder %s221, %s222
    %p234 = scmp.eq.s32.totalorder %s23, 1
    %p235 = por %p233, %p234
    %p237 = scmp.ne.s32.totalorder %s222, %s236
    %p238 = scmp.eq.s32.totalorder %s23, 0
    %p239 = por %p237, %p238
    %s241 = sadd.s32 %s240, 1
    %p244 = scmp.eq.s32.totalorder %s17, 1
    %p245 = scmp.ne.s32.totalorder %s240, %s242
    %p246 = scmp.eq.s32.totalorder %s17, 0
    %p247 = por %p245, %p246
    %p248 = scmp.ne.s32.totalorder %s240, %s242
    %p249 = scmp.eq.s32.totalorder %s22, 1
    %p250 = por %p248, %p249
    %p251 = scmp.ne.s32.totalorder %s242, %s243
    %p252 = scmp.eq.s32.totalorder %s22, 0
    %p253 = por %p251, %p252
    %p254 = scmp.ne.s32.totalorder %s242, %s243
    %p255 = scmp.eq.s32.totalorder %s23, 1
    %p256 = por %p254, %p255
    %p258 = scmp.ne.s32.totalorder %s243, %s257
    %p259 = scmp.eq.s32.totalorder %s23, 0
    %p260 = por %p258, %p259
    %s261 = ssub.s32 %s17, %s24
    %p262 = scmp.eq.s32.totalorder %s261, 0
    %s264 = sadd.s32 %s263, 1
    %s265 = scalar_select %p262, %s263, %s264
    %p268 = pneg %p262
    %p269 = scmp.eq.s32.totalorder %s17, 1
    %p270 = por %p268, %p269
    %p271 = scmp.ne.s32.totalorder %s263, %s266
    %p272 = scmp.eq.s32.totalorder %s17, 0
    %p273 = por %p271, %p272
    %p274 = scmp.ne.s32.totalorder %s263, %s266
    %p275 = scmp.eq.s32.totalorder %s22, 1
    %p276 = por %p274, %p275
    %p277 = scmp.ne.s32.totalorder %s266, %s267
    %p278 = scmp.eq.s32.totalorder %s22, 0
    %p279 = por %p277, %p278
    %p280 = scmp.ne.s32.totalorder %s266, %s267
    %p281 = scmp.eq.s32.totalorder %s23, 1
    %p282 = por %p280, %p281
    %p284 = scmp.ne.s32.totalorder %s267, %s283
    %p285 = scmp.eq.s32.totalorder %s23, 0
    %p286 = por %p284, %p285
    %p287 = scmp.le.s32.totalorder 1, %s17
    %p288 = scmp.lt.s32.totalorder %s17, 3
    %p289 = pnand %p287, %p288
    %p290 = pneg %p289
    // Predicated region
    $region9: #{vit_forward.5} parent=5 // pred_check
      _
    $region10: #{vit_forward.5} parent=5 // pred_check_branch
      %292 = sbr.rel (%p289) target = $region12
    $region11: #{vit_forward.5} parent=5 // pred_region
      %s293 = ssub.s32 %s17, 1
      // Predicated region
      $region13: #{vit_forward.5} parent=11 // pred_check
        %p294 = pneg %p64
      $region14: #{vit_forward.5} parent=11 // pred_check_branch
        %296 = sbr.rel (%p294) target = $region16
      $region15: #{vit_forward.5} parent=11 // pred_region
        _
      $region16: #{vit_forward.5} parent=11 // pred_fallthru
        _
      // Predicated region
      $region17: #{vit_forward.5} parent=11 // pred_check
        %p297 = pneg %p85
      $region18: #{vit_forward.5} parent=11 // pred_check_branch
        %299 = sbr.rel (%p297) target = $region20
      $region19: #{vit_forward.5} parent=11 // pred_region
        _
      $region20: #{vit_forward.5} parent=11 // pred_fallthru
        _
      // Predicated region
      $region21: #{vit_forward.5} parent=11 // pred_check
        %p300 = pneg %p106
      $region22: #{vit_forward.5} parent=11 // pred_check_branch
        %302 = sbr.rel (%p300) target = $region24
      $region23: #{vit_forward.5} parent=11 // pred_region
        _
      $region24: #{vit_forward.5} parent=11 // pred_fallthru
        _
      // Predicated region
      $region25: #{vit_forward.5} parent=11 // pred_check
        %p303 = pneg %p127
      $region26: #{vit_forward.5} parent=11 // pred_check_branch
        %305 = sbr.rel (%p303) target = $region28
      $region27: #{vit_forward.5} parent=11 // pred_region
        _
      $region28: #{vit_forward.5} parent=11 // pred_fallthru
        _
      // Predicated region
      $region29: #{vit_forward.5} parent=11 // pred_check
        %p306 = pneg %p148
      $region30: #{vit_forward.5} parent=11 // pred_check_branch
        %308 = sbr.rel (%p306) target = $region32
      $region31: #{vit_forward.5} parent=11 // pred_region
        _
      $region32: #{vit_forward.5} parent=11 // pred_fallthru
        _
      // Predicated region
      $region33: #{vit_forward.5} parent=11 // pred_check
        %p309 = pneg %p169
      $region34: #{vit_forward.5} parent=11 // pred_check_branch
        %311 = sbr.rel (%p309) target = $region36
      $region35: #{vit_forward.5} parent=11 // pred_region
        _
      $region36: #{vit_forward.5} parent=11 // pred_fallthru
        _
      // Predicated region
      $region37: #{vit_forward.5} parent=11 // pred_check
        %p312 = pneg %p190
      $region38: #{vit_forward.5} parent=11 // pred_check_branch
        %314 = sbr.rel (%p312) target = $region40
      $region39: #{vit_forward.5} parent=11 // pred_region
        _
      $region40: #{vit_forward.5} parent=11 // pred_fallthru
        _
      // Predicated region
      $region41: #{vit_forward.5} parent=11 // pred_check
        %p315 = pneg %p211
      $region42: #{vit_forward.5} parent=11 // pred_check_branch
        %317 = sbr.rel (%p315) target = $region44
      $region43: #{vit_forward.5} parent=11 // pred_region
        _
      $region44: #{vit_forward.5} parent=11 // pred_fallthru
        _
      // Predicated region
      $region45: #{vit_forward.5} parent=11 // pred_check
        %p318 = pneg %p232
      $region46: #{vit_forward.5} parent=11 // pred_check_branch
        %320 = sbr.rel (%p318) target = $region48
      $region47: #{vit_forward.5} parent=11 // pred_region
        _
      $region48: #{vit_forward.5} parent=11 // pred_fallthru
        _
      // Predicated region
      $region49: #{vit_forward.5} parent=11 // pred_check
        %p321 = pneg %p253
      $region50: #{vit_forward.5} parent=11 // pred_check_branch
        %323 = sbr.rel (%p321) target = $region52
      $region51: #{vit_forward.5} parent=11 // pred_region
        _
      $region52: #{vit_forward.5} parent=11 // pred_fallthru
        _
    $region12: #{vit_forward.5} parent=5 // pred_fallthru
      _
    %p324 = scmp.lt.s32.totalorder %s17, 2
    // Predicated region
    $region53: #{vit_forward.5} parent=5 // pred_check
      %p325 = pneg %p324
    $region54: #{vit_forward.5} parent=5 // pred_check_branch
      %327 = sbr.rel (%p325) target = $region56
    $region55: #{vit_forward.5} parent=5 // pred_region
      // Predicated region
      $region57: #{vit_forward.5} parent=55 // pred_check
        %p328 = pneg %p37
      $region58: #{vit_forward.5} parent=55 // pred_check_branch
        %330 = sbr.rel (%p328) target = $region60
      $region59: #{vit_forward.5} parent=55 // pred_region
        %p331 = scmp.lt.s32.totalorder %s17, 1
        %s332 = scalar_select %p331, %s17, 1
        %s333 = smul.addr %s332, 3
        %s334 = smul.addr %s333, 4
        %s335 = scalar_lea.vmem %s0, %s334
      $region60: #{vit_forward.5} parent=55 // pred_fallthru
        _
    $region56: #{vit_forward.5} parent=5 // pred_fallthru
      _
    %p336 = scmp.le.s32.totalorder 1, %s17
    %p337 = scmp.lt.s32.totalorder %s17, 3
    %p338 = pnand %p336, %p337
    %p339 = pneg %p338
    // Predicated region
    $region61: #{vit_forward.5} parent=5 // pred_check
      _
    $region62: #{vit_forward.5} parent=5 // pred_check_branch
      %341 = sbr.rel (%p338) target = $region64
    $region63: #{vit_forward.5} parent=5 // pred_region
      %s342 = ssub.s32 %s17, 1
      %p343 = scmp.lt.s32.totalorder %s22, 1
      %s344 = scalar_select %p343, %s22, 1
      %s345 = smul.addr %s344, 3
      %s346 = smul.addr %s345, 4
      %s347 = scalar_lea.vmem %s0, %s346
      %p348 = pneg %p43
      %p349 = pneg %p40
      %p350 = pneg %p64
      %p351 = pneg %p61
      %p352 = pneg %p85
      %p353 = pneg %p82
      %p354 = pneg %p106
      %p355 = pneg %p103
      %p356 = pneg %p127
      %p357 = pneg %p124
      %p358 = pneg %p148
      %p359 = pneg %p145
      %p360 = pneg %p169
      %p361 = pneg %p166
      %p362 = pneg %p190
      %p363 = pneg %p187
      %p364 = pneg %p211
      %p365 = pneg %p208
      %p366 = pneg %p232
      %p367 = pneg %p229
      %p368 = pneg %p253
      %p369 = pneg %p250
      %p370 = pneg %p279
      %p371 = pneg %p276
      %p372 = scmp.lt.s32.totalorder %s22, 1
      %s373 = scalar_select %p372, %s22, 1
      %s374 = smul.addr %s373, 3
      %s375 = smul.addr %s374, 4
      %s376 = scalar_lea.vmem %s11, %s375
      %p377 = scmp.lt.s32.totalorder %s22, 1
      %s378 = scalar_select %p377, %s22, 1
      %s379 = smul.addr %s378, 3
      %s380 = smul.addr %s379, 4
      %s381 = scalar_lea.vmem %s0, %s380
      %p382 = scmp.lt.s32.totalorder %s22, 1
      %s383 = scalar_select %p382, %s22, 1
      %s384 = smul.addr %s383, 3
      %s385 = smul.addr %s384, 4
      %s386 = scalar_lea.vmem %s11, %s385
      %v388 = vld [vmem:[%s381] sm:$0xf]
      %v389 = vld [vmem:[%s381 + $0x4] sm:$0xf]
      %v390 = vld [vmem:[%s381 + $0x8] sm:$0x1]
      %v391 = vunpack.c.l.bf16 %v388
      %v392 = vunpack.c.l.bf16 %v389
      %v393 = vunpack.c.l.bf16 %v390
      %394 = vadd.xlane.f32.xlu0 %v391
      %v395 = vpop.xlane.xlu0 %394
      %396 = vadd.xlane.f32.xlu0 %v392
      %v397 = vpop.xlane.xlu0 %396
      %vm398 = vcmask 1040384
      %v399 = vsel %vm398, %v393, 0.0
      %400 = vadd.xlane.f32.xlu0 %v399
      %v401 = vpop.xlane.xlu0 %400
      %v402 = vrcp.pop 128.0
      %v403 = vmul.f32 %v395, %v402
      %v404 = vmul.f32 %v397, %v402
      %v405 = vmul.f32 %v401, %v402
      %v406 = vsub.f32 %v391, %v403
      %v407 = vsub.f32 %v392, %v404
      %v408 = vsub.f32 %v393, %v405
      %v409 = vmul.f32 %v406, %v406
      %v410 = vmul.f32 %v407, %v407
      %v411 = vmul.f32 %v408, %v408
      %412 = vadd.xlane.f32.xlu0 %v409
      %v413 = vpop.xlane.xlu0 %412
      %414 = vadd.xlane.f32.xlu0 %v410
      %v415 = vpop.xlane.xlu0 %414
      %v416 = vsel %vm398, %v411, 0.0
      %417 = vadd.xlane.f32.xlu0 %v416
      %v418 = vpop.xlane.xlu0 %417
      %v419 = vmul.f32 %v413, %v402
      %v420 = vmul.f32 %v415, %v402
      %v421 = vmul.f32 %v418, %v402
      %v422 = vadd.f32 %v419, 1e-05
      %v423 = vadd.f32 %v420, 1e-05
      %v424 = vadd.f32 %v421, 1e-05
      %v425 = vrsqrt.pop %v422
      %v426 = vrsqrt.pop %v423
      %v427 = vrsqrt.pop %v424
      %v428 = vmul.f32 %v406, %v425
      %v429 = vmul.f32 %v407, %v426
      %v430 = vmul.f32 %v408, %v427
      %v431 = vld [vmem:[%s1] sm:$0x1]
      %v433 = vlaneseq
      %v434 = vshrl.u32 %v433, 7
      %v435 = vsub.s32 0, %v434
      %v436 = vrot.slane %v431, %v435
      %v438 = vmul.f32 %v428, %v436
      %v439 = vmul.f32 %v429, %v436
      %v440 = vmul.f32 %v430, %v436
      %v441 = vld [vmem:[%s2] sm:$0x1]
      %v443 = vlaneseq
      %v444 = vshrl.u32 %v443, 7
      %v445 = vsub.s32 0, %v444
      %v446 = vrot.slane %v441, %v445
      %v448 = vadd.f32 %v438, %v446
      %v449 = vadd.f32 %v439, %v446
      %v450 = vadd.f32 %v440, %v446
      %v451 = vld [vmem:[%s3] sm:$0xff]
      %v452 = vld [vmem:[%s3 + $0x8] sm:$0xf]
      %v453 = vld [vmem:[%s3 + $0xc] sm:$0xff]
      %v454 = vld [vmem:[%s3 + $0x14] sm:$0xf]
      %v455 = vld [vmem:[%s3 + $0x18] sm:$0xff]
      %v456 = vld [vmem:[%s3 + $0x20] sm:$0xf]
      %v457 = vld [vmem:[%s3 + $0x24] sm:$0xff]
      %v458 = vld [vmem:[%s3 + $0x2c] sm:$0xf]
      %v459 = vld [vmem:[%s3 + $0x30] sm:$0xff]
      %v460 = vld [vmem:[%s3 + $0x38] sm:$0xf]
      %v461 = vld [vmem:[%s3 + $0x3c] sm:$0xff]
      %v462 = vld [vmem:[%s3 + $0x44] sm:$0xf]
      %v463 = vld [vmem:[%s3 + $0x48] sm:$0xff]
      %v464 = vld [vmem:[%s3 + $0x50] sm:$0xf]
      %v465 = vld [vmem:[%s3 + $0x54] sm:$0xff]
      %v466 = vld [vmem:[%s3 + $0x5c] sm:$0xf]
      %v467 = vld [vmem:[%s3 + $0x60] sm:$0xff]
      %v468 = vld [vmem:[%s3 + $0x68] sm:$0xf]
      %v469 = vld [vmem:[%s3 + $0x6c] sm:$0xff]
      %v470 = vld [vmem:[%s3 + $0x74] sm:$0xf]
      %v471 = vld [vmem:[%s3 + $0x78] sm:$0xff]
      %v472 = vld [vmem:[%s3 + $0x80] sm:$0xf]
      %v473 = vld [vmem:[%s3 + $0x84] sm:$0xff]
      %v474 = vld [vmem:[%s3 + $0x8c] sm:$0xf]
      %v475 = vld [vmem:[%s3 + $0x90] sm:$0xff]
      %v476 = vld [vmem:[%s3 + $0x98] sm:$0xf]
      %v477 = vld [vmem:[%s3 + $0x9c] sm:$0xff]
      %v478 = vld [vmem:[%s3 + $0xa4] sm:$0xf]
      %v479 = vld [vmem:[%s3 + $0xa8] sm:$0xff]
      %v480 = vld [vmem:[%s3 + $0xb0] sm:$0xf]
      %v481 = vld [vmem:[%s3 + $0xb4] sm:$0xff]
      %v482 = vld [vmem:[%s3 + $0xbc] sm:$0xf]
      %v483 = vpack.c.bf16 %v449, %v448
      %v484 = vpack.c.bf16 %v450, %v450
      %v517 = vunpack.c.l.b16 %v451
      %v518 = vunpack.c.h.b16 %v451
      %v519 = vunpack.c.l.b16 %v452
      %v520 = vunpack.c.l.b16 %v453
      %v521 = vunpack.c.h.b16 %v453
      %v522 = vunpack.c.l.b16 %v454
      %v523 = vunpack.c.l.b16 %v455
      %v524 = vunpack.c.h.b16 %v455
      %v525 = vunpack.c.l.b16 %v456
      %v526 = vunpack.c.l.b16 %v457
      %v527 = vunpack.c.h.b16 %v457
      %v528 = vunpack.c.l.b16 %v458
      %v529 = vunpack.c.l.b16 %v459
      %v530 = vunpack.c.h.b16 %v459
      %v531 = vunpack.c.l.b16 %v460
      %v532 = vunpack.c.l.b16 %v461
      %v533 = vunpack.c.h.b16 %v461
      %v534 = vunpack.c.l.b16 %v462
      %v535 = vunpack.c.l.b16 %v463
      %v536 = vunpack.c.h.b16 %v463
      %v537 = vunpack.c.l.b16 %v464
      %v538 = vunpack.c.l.b16 %v465
      %v539 = vunpack.c.h.b16 %v465
      %v540 = vunpack.c.l.b16 %v466
      %v541 = vunpack.c.l.b16 %v467
      %v542 = vunpack.c.h.b16 %v467
      %v543 = vunpack.c.l.b16 %v468
      %v544 = vunpack.c.l.b16 %v469
      %v545 = vunpack.c.h.b16 %v469
      %v546 = vunpack.c.l.b16 %v470
      %v547 = vunpack.c.l.b16 %v471
      %v548 = vunpack.c.h.b16 %v471
      %v549 = vunpack.c.l.b16 %v472
      %v550 = vunpack.c.l.b16 %v473
      %v551 = vunpack.c.h.b16 %v473
      %v552 = vunpack.c.l.b16 %v474
      %v553 = vunpack.c.l.b16 %v475
      %v554 = vunpack.c.h.b16 %v475
      %v555 = vunpack.c.l.b16 %v476
      %v556 = vunpack.c.l.b16 %v477
      %v557 = vunpack.c.h.b16 %v477
      %v558 = vunpack.c.l.b16 %v478
      %v559 = vunpack.c.l.b16 %v479
      %v560 = vunpack.c.h.b16 %v479
      %v561 = vunpack.c.l.b16 %v480
      %v562 = vunpack.c.l.b16 %v481
      %v563 = vunpack.c.h.b16 %v481
      %v564 = vunpack.c.l.b16 %v482
      %v565 = vpack.c.b16 %v520, %v517
      %v566 = vpack.c.b16 %v521, %v518
      %v567 = vpack.c.b16 %v522, %v519
      %v568 = vpack.c.b16 %v526, %v523
      %v569 = vpack.c.b16 %v527, %v524
      %v570 = vpack.c.b16 %v528, %v525
      %v571 = vpack.c.b16 %v532, %v529
      %v572 = vpack.c.b16 %v533, %v530
      %v573 = vpack.c.b16 %v534, %v531
      %v574 = vpack.c.b16 %v538, %v535
      %v575 = vpack.c.b16 %v539, %v536
      %v576 = vpack.c.b16 %v540, %v537
      %v577 = vpack.c.b16 %v544, %v541
      %v578 = vpack.c.b16 %v545, %v542
      %v579 = vpack.c.b16 %v546, %v543
      %v580 = vpack.c.b16 %v550, %v547
      %v581 = vpack.c.b16 %v551, %v548
      %v582 = vpack.c.b16 %v552, %v549
      %v583 = vpack.c.b16 %v556, %v553
      %v584 = vpack.c.b16 %v557, %v554
      %v585 = vpack.c.b16 %v558, %v555
      %v586 = vpack.c.b16 %v562, %v559
      %v587 = vpack.c.b16 %v563, %v560
      %v588 = vpack.c.b16 %v564, %v561
      %613 = vmatprep.subr.bf16.mxu0 %v587
      %614 = vmatpush1.bf16.msra.mxu0 %v586
      %615 = vmatprep.subr.bf16.mxu0 %v584
      %616 = vmatpush1.bf16.msra.mxu0 %v583
      %617 = vmatprep.subr.bf16.mxu0 %v581
      %618 = vmatpush1.bf16.msra.mxu0 %v580
      %619 = vmatprep.subr.bf16.mxu0 %v578
      %620 = vmatpush1.bf16.msra.mxu0 %v577
      %621 = vmatprep.subr.bf16.mxu0 %v575
      %622 = vmatpush1.bf16.msra.mxu0 %v574
      %623 = vmatprep.subr.bf16.mxu0 %v572
      %624 = vmatpush1.bf16.msra.mxu0 %v571
      %625 = vmatprep.subr.bf16.mxu0 %v569
      %626 = vmatpush1.bf16.msra.mxu0 %v568
      %627 = vmatprep.subr.bf16.mxu0 %v566
      %628 = vmatpush1.bf16.msra.mxu0 %v565
      %629 = vmatprep.subr.bf16.mxu0 0
      %630 = vmatpush2.bf16.msra.mxu0 0
      %631 = vmatprep.subr.bf16.mxu0 0
      %632 = vmatpush2.bf16.msra.mxu0 0
      %633 = vmatprep.subr.bf16.mxu0 0
      %634 = vmatpush2.bf16.msra.mxu0 0
      %635 = vmatprep.subr.bf16.mxu0 0
      %636 = vmatpush2.bf16.msra.mxu0 0
      %637 = vmatprep.subr.bf16.mxu0 0
      %638 = vmatpush2.bf16.msra.mxu0 0
      %639 = vmatprep.subr.bf16.mxu0 0
      %640 = vmatpush2.bf16.msra.mxu0 0
      %641 = vmatprep.subr.bf16.mxu0 0
      %642 = vmatpush2.bf16.msra.mxu0 0
      %643 = vmatprep.subr.bf16.mxu0 0
      %644 = vmatpush2.bf16.msra.mxu0 0
      %645 = vmatprep.mubr.bf16.mxu0 0
      %646 = vmatmul.mubr.bf16.gmra.mxu0 %v483
      %v647 = vpop.f32.mrf.mxu0
      %v648 = vadd.f32 0.0, %v647
      %v649 = vpop.f32.mrf.mxu0
      %v650 = vadd.f32 0.0, %v649
      %v651 = vpop.f32.mrf.mxu0
      %v652 = vadd.f32 0.0, %v651
      %v653 = vpop.f32.mrf.mxu0
      %v654 = vadd.f32 0.0, %v653
      %655 = vmatprep.mubr.bf16.mxu0 0
      %656 = vmatmul.mubr.bf16.gmra.mxu0 %v484
      %v657 = vpop.f32.mrf.mxu0
      %v658 = vadd.f32 0.0, %v657
      %v659 = vpop.f32.mrf.mxu0
      %v660 = vadd.f32 0.0, %v659
      %v661 = vpop.f32.mrf.mxu0
      %v662 = vpop.f32.mrf.mxu0
      %663 = vdwg.mxu0
      %664 = vmatprep.subr.bf16.mxu0 0
      %665 = vmatpush1.bf16.msra.mxu0 %v588
      %666 = vmatprep.subr.bf16.mxu0 0
      %667 = vmatpush1.bf16.msra.mxu0 %v585
      %668 = vmatprep.subr.bf16.mxu0 0
      %669 = vmatpush1.bf16.msra.mxu0 %v582
      %670 = vmatprep.subr.bf16.mxu0 0
      %671 = vmatpush1.bf16.msra.mxu0 %v579
      %672 = vmatprep.subr.bf16.mxu0 0
      %673 = vmatpush1.bf16.msra.mxu0 %v576
      %674 = vmatprep.subr.bf16.mxu0 0
      %675 = vmatpush1.bf16.msra.mxu0 %v573
      %676 = vmatprep.subr.bf16.mxu0 0
      %677 = vmatpush1.bf16.msra.mxu0 %v570
      %678 = vmatprep.subr.bf16.mxu0 0
      %679 = vmatpush1.bf16.msra.mxu0 %v567
      %680 = vmatprep.subr.bf16.mxu0 0
      %681 = vmatpush2.bf16.msra.mxu0 0
      %682 = vmatprep.subr.bf16.mxu0 0
      %683 = vmatpush2.bf16.msra.mxu0 0
      %684 = vmatprep.subr.bf16.mxu0 0
      %685 = vmatpush2.bf16.msra.mxu0 0
      %686 = vmatprep.subr.bf16.mxu0 0
      %687 = vmatpush2.bf16.msra.mxu0 0
      %688 = vmatprep.subr.bf16.mxu0 0
      %689 = vmatpush2.bf16.msra.mxu0 0
      %690 = vmatprep.subr.bf16.mxu0 0
      %691 = vmatpush2.bf16.msra.mxu0 0
      %692 = vmatprep.subr.bf16.mxu0 0
      %693 = vmatpush2.bf16.msra.mxu0 0
      %694 = vmatprep.subr.bf16.mxu0 0
      %695 = vmatpush2.bf16.msra.mxu0 0
      %696 = vmatprep.mubr.bf16.mxu0 0
      %697 = vmatmul.mubr.bf16.gmra.mxu0 %v483
      %v698 = vpop.f32.mrf.mxu0
      %v699 = vadd.f32 0.0, %v698
      %v700 = vpop.f32.mrf.mxu0
      %v701 = vpop.f32.mrf.mxu0
      %v702 = vadd.f32 0.0, %v701
      %v703 = vpop.f32.mrf.mxu0
      %704 = vmatprep.mubr.bf16.mxu0 0
      %705 = vmatmul.mubr.bf16.gmra.mxu0 %v484
      %v706 = vpop.f32.mrf.mxu0
      %v707 = vadd.f32 0.0, %v706
      %v708 = vpop.f32.mrf.mxu0
      %v709 = vpop.f32.mrf.mxu0
      %v710 = vpop.f32.mrf.mxu0
      %711 = vdwg.mxu0
      %v712 = vpack.c.bf16 %v652, %v648
      %v713 = vpack.c.bf16 %v658, %v658
      %v714 = vpack.c.bf16 %v654, %v650
      %v715 = vpack.c.bf16 %v660, %v660
      %vm716 = vcmask 523264
      %v718 = vsel %vm716, %v712, 0
      %v721 = vsel %vm716, %v713, 0
      %v724 = vsel %vm716, %v714, 0
      %v727 = vsel %vm716, %v715, 0
      %729 = vmatprep.subr.bf16.mxu0 0
      %730 = vmatpush1.bf16.xpose.msra.mxu0 0
      %731 = vmatprep.subr.bf16.mxu0 0
      %732 = vmatpush1.bf16.xpose.msra.mxu0 0
      %733 = vmatprep.subr.bf16.mxu0 0
      %734 = vmatpush1.bf16.xpose.msra.mxu0 0
      %735 = vmatprep.subr.bf16.mxu0 0
      %736 = vmatpush1.bf16.xpose.msra.mxu0 0
      %737 = vmatprep.subr.bf16.mxu0 0
      %738 = vmatpush1.bf16.xpose.msra.mxu0 0
      %739 = vmatprep.subr.bf16.mxu0 0
      %740 = vmatpush1.bf16.xpose.msra.mxu0 0
      %741 = vmatprep.subr.bf16.mxu0 0
      %742 = vmatpush1.bf16.xpose.msra.mxu0 %v727
      %743 = vmatprep.subr.bf16.mxu0 0
      %744 = vmatpush1.bf16.xpose.msra.mxu0 %v724
      %745 = vmatprep.subr.bf16.mxu0 0
      %746 = vmatpush2.bf16.xpose.msra.mxu0 0
      %747 = vmatprep.subr.bf16.mxu0 0
      %748 = vmatpush2.bf16.xpose.msra.mxu0 0
      %749 = vmatprep.subr.bf16.mxu0 0
      %750 = vmatpush2.bf16.xpose.msra.mxu0 0
      %751 = vmatprep.subr.bf16.mxu0 0
      %752 = vmatpush2.bf16.xpose.msra.mxu0 0
      %753 = vmatprep.subr.bf16.mxu0 0
      %754 = vmatpush2.bf16.xpose.msra.mxu0 0
      %755 = vmatprep.subr.bf16.mxu0 0
      %756 = vmatpush2.bf16.xpose.msra.mxu0 0
      %757 = vmatprep.subr.bf16.mxu0 0
      %758 = vmatpush2.bf16.xpose.msra.mxu0 0
      %759 = vmatprep.subr.bf16.mxu0 0
      %760 = vmatpush2.bf16.xpose.msra.mxu0 0
      %761 = vmatprep.mubr.bf16.mxu0 0
      %762 = vmatmul.mubr.bf16.gmra.mxu0 %v718
      %v763 = vpop.f32.mrf.mxu0
      %v764 = vadd.f32 0.0, %v763
      %v765 = vpop.f32.mrf.mxu0
      %v766 = vpop.f32.mrf.mxu0
      %v767 = vadd.f32 0.0, %v766
      %v768 = vpop.f32.mrf.mxu0
      %769 = vmatprep.mubr.bf16.mxu0 0
      %770 = vmatmul.mubr.bf16.gmra.mxu0 %v721
      %v771 = vpop.f32.mrf.mxu0
      %v772 = vadd.f32 0.0, %v771
      %v773 = vpop.f32.mrf.mxu0
      %v774 = vpop.f32.mrf.mxu0
      %v775 = vpop.f32.mrf.mxu0
      %776 = vdwg.mxu0
      %v777 = vmul.f32 %v764, 0.125
      %v778 = vmul.f32 %v767, 0.125
      %v779 = vmul.f32 %v772, 0.125
      %vm780 = vcmask 138240
      %v781 = vsel %vm780, %v777, -inf
      %782 = vmax.xlane.f32.xlu0 %v781
      %v783 = vpop.xlane.xlu0 %782
      %v784 = vsel %vm780, %v778, -inf
      %785 = vmax.xlane.f32.xlu0 %v784
      %v786 = vpop.xlane.xlu0 %785
      %vm787 = vcmask 131072
      %v788 = vsel %vm787, %v779, -inf
      %789 = vmax.xlane.f32.xlu0 %v788
      %v790 = vpop.xlane.xlu0 %789
      %v791 = vsub.f32 %v777, %v783
      %v792 = vsub.f32 %v778, %v786
      %v793 = vsub.f32 %v779, %v790
      %v794 = vmul.f32 %v791, 1.442695
      %v795 = vpow.pop %v794
      %v796 = vmul.f32 %v792, 1.442695
      %v797 = vpow.pop %v796
      %v798 = vmul.f32 %v793, 1.442695
      %v799 = vpow.pop %v798
      %v800 = vsel %vm780, %v795, 0.0
      %801 = vadd.xlane.f32.xlu0 %v800
      %v802 = vpop.xlane.xlu0 %801
      %v803 = vsel %vm780, %v797, 0.0
      %804 = vadd.xlane.f32.xlu0 %v803
      %v805 = vpop.xlane.xlu0 %804
      %v806 = vsel %vm787, %v799, 0.0
      %807 = vadd.xlane.f32.xlu0 %v806
      %v808 = vpop.xlane.xlu0 %807
      %v809 = vrcp.pop %v802
      %v810 = vrcp.pop %v805
      %v811 = vrcp.pop %v808
      %v812 = vmul.f32 %v795, %v809
      %v813 = vmul.f32 %v797, %v810
      %v814 = vmul.f32 %v799, %v811
      %v815 = vpack.c.bf16 %v813, %v812
      %v816 = vpack.c.bf16 %v814, %v814
      %v817 = vpack.c.bf16 %v702, %v699
      %v818 = vpack.c.bf16 %v707, %v707
      %v820 = vsel %vm780, %v815, 0
      %v823 = vsel %vm780, %v816, 0
      %v825 = vsel 0, 4294967295, 65535
      %v826 = vsel %vm398, %v825, 0
      %v828 = vand.u32 %v818, %v826
      %830 = vmatprep.subr.bf16.mxu0 0
      %831 = vmatpush1.bf16.msra.mxu0 0
      %832 = vmatprep.subr.bf16.mxu0 0
      %833 = vmatpush1.bf16.msra.mxu0 0
      %834 = vmatprep.subr.bf16.mxu0 0
      %835 = vmatpush1.bf16.msra.mxu0 0
      %836 = vmatprep.subr.bf16.mxu0 0
      %837 = vmatpush1.bf16.msra.mxu0 0
      %838 = vmatprep.subr.bf16.mxu0 0
      %839 = vmatpush1.bf16.msra.mxu0 0
      %840 = vmatprep.subr.bf16.mxu0 0
      %841 = vmatpush1.bf16.msra.mxu0 0
      %842 = vmatprep.subr.bf16.mxu0 0
      %843 = vmatpush1.bf16.msra.mxu0 %v828
      %844 = vmatprep.subr.bf16.mxu0 0
      %845 = vmatpush1.bf16.msra.mxu0 %v817
      %846 = vmatprep.subr.bf16.mxu0 0
      %847 = vmatpush2.bf16.msra.mxu0 0
      %848 = vmatprep.subr.bf16.mxu0 0
      %849 = vmatpush2.bf16.msra.mxu0 0
      %850 = vmatprep.subr.bf16.mxu0 0
      %851 = vmatpush2.bf16.msra.mxu0 0
      %852 = vmatprep.subr.bf16.mxu0 0
      %853 = vmatpush2.bf16.msra.mxu0 0
      %854 = vmatprep.subr.bf16.mxu0 0
      %855 = vmatpush2.bf16.msra.mxu0 0
      %856 = vmatprep.subr.bf16.mxu0 0
      %857 = vmatpush2.bf16.msra.mxu0 0
      %858 = vmatprep.subr.bf16.mxu0 0
      %859 = vmatpush2.bf16.msra.mxu0 0
      %860 = vmatprep.subr.bf16.mxu0 0
      %861 = vmatpush2.bf16.msra.mxu0 0
      %862 = vmatprep.mubr.bf16.mxu0 0
      %863 = vmatmul.mubr.bf16.gmra.mxu0 %v820
      %v864 = vpop.f32.mrf.mxu0
      %v865 = vadd.f32 0.0, %v864
      %v866 = vpop.f32.mrf.mxu0
      %v867 = vpop.f32.mrf.mxu0
      %v868 = vadd.f32 0.0, %v867
      %v869 = vpop.f32.mrf.mxu0
      %870 = vmatprep.mubr.bf16.mxu0 0
      %871 = vmatmul.mubr.bf16.gmra.mxu0 %v823
      %v872 = vpop.f32.mrf.mxu0
      %v873 = vadd.f32 0.0, %v872
      %v874 = vpop.f32.mrf.mxu0
      %v875 = vpop.f32.mrf.mxu0
      %v876 = vpop.f32.mrf.mxu0
      %877 = vdwg.mxu0
      %v878 = vpack.c.bf16 %v868, %v865
      %v879 = vpack.c.bf16 %v873, %v873
      %v880 = vld [vmem:[%s4] sm:$0xf]
      %v881 = vld [vmem:[%s4 + $0x4] sm:$0xf]
      %v882 = vld [vmem:[%s4 + $0x8] sm:$0xf]
      %v883 = vld [vmem:[%s4 + $0xc] sm:$0xf]
      %v884 = vld [vmem:[%s4 + $0x10] sm:$0xf]
      %v885 = vld [vmem:[%s4 + $0x14] sm:$0xf]
      %v886 = vld [vmem:[%s4 + $0x18] sm:$0xf]
      %v887 = vld [vmem:[%s4 + $0x1c] sm:$0xf]
      %890 = vrot.lane.b32.xlu0 %v712, 64
      %v891 = vpop.permute.xlu0 %890
      %892 = vrot.lane.b32.xlu0 %v713, 64
      %v893 = vpop.permute.xlu0 %892
      %896 = vrot.lane.b32.xlu0 %v714, 64
      %v897 = vpop.permute.xlu0 %896
      %898 = vrot.lane.b32.xlu0 %v715, 64
      %v899 = vpop.permute.xlu0 %898
      %v901 = vsel %vm716, %v891, 0
      %v904 = vsel %vm716, %v893, 0
      %v907 = vsel %vm716, %v897, 0
      %v910 = vsel %vm716, %v899, 0
      %912 = vmatprep.subr.bf16.mxu0 0
      %913 = vmatpush1.bf16.xpose.msra.mxu0 0
      %914 = vmatprep.subr.bf16.mxu0 0
      %915 = vmatpush1.bf16.xpose.msra.mxu0 0
      %916 = vmatprep.subr.bf16.mxu0 0
      %917 = vmatpush1.bf16.xpose.msra.mxu0 0
      %918 = vmatprep.subr.bf16.mxu0 0
      %919 = vmatpush1.bf16.xpose.msra.mxu0 0
      %920 = vmatprep.subr.bf16.mxu0 0
      %921 = vmatpush1.bf16.xpose.msra.mxu0 0
      %922 = vmatprep.subr.bf16.mxu0 0
      %923 = vmatpush1.bf16.xpose.msra.mxu0 0
      %924 = vmatprep.subr.bf16.mxu0 0
      %925 = vmatpush1.bf16.xpose.msra.mxu0 %v910
      %926 = vmatprep.subr.bf16.mxu0 0
      %927 = vmatpush1.bf16.xpose.msra.mxu0 %v907
      %928 = vmatprep.subr.bf16.mxu0 0
      %929 = vmatpush2.bf16.xpose.msra.mxu0 0
      %930 = vmatprep.subr.bf16.mxu0 0
      %931 = vmatpush2.bf16.xpose.msra.mxu0 0
      %932 = vmatprep.subr.bf16.mxu0 0
      %933 = vmatpush2.bf16.xpose.msra.mxu0 0
      %934 = vmatprep.subr.bf16.mxu0 0
      %935 = vmatpush2.bf16.xpose.msra.mxu0 0
      %936 = vmatprep.subr.bf16.mxu0 0
      %937 = vmatpush2.bf16.xpose.msra.mxu0 0
      %938 = vmatprep.subr.bf16.mxu0 0
      %939 = vmatpush2.bf16.xpose.msra.mxu0 0
      %940 = vmatprep.subr.bf16.mxu0 0
      %941 = vmatpush2.bf16.xpose.msra.mxu0 0
      %942 = vmatprep.subr.bf16.mxu0 0
      %943 = vmatpush2.bf16.xpose.msra.mxu0 0
      %944 = vmatprep.mubr.bf16.mxu0 0
      %945 = vmatmul.mubr.bf16.gmra.mxu0 %v901
      %v946 = vpop.f32.mrf.mxu0
      %v947 = vadd.f32 0.0, %v946
      %v948 = vpop.f32.mrf.mxu0
      %v949 = vpop.f32.mrf.mxu0
      %v950 = vadd.f32 0.0, %v949
      %v951 = vpop.f32.mrf.mxu0
      %952 = vmatprep.mubr.bf16.mxu0 0
      %953 = vmatmul.mubr.bf16.gmra.mxu0 %v904
      %v954 = vpop.f32.mrf.mxu0
      %v955 = vadd.f32 0.0, %v954
      %v956 = vpop.f32.mrf.mxu0
      %v957 = vpop.f32.mrf.mxu0
      %v958 = vpop.f32.mrf.mxu0
      %959 = vdwg.mxu0
      %v960 = vmul.f32 %v947, 0.125
      %v961 = vmul.f32 %v950, 0.125
      %v962 = vmul.f32 %v955, 0.125
      %v963 = vsel %vm780, %v960, -inf
      %964 = vmax.xlane.f32.xlu0 %v963
      %v965 = vpop.xlane.xlu0 %964
      %v966 = vsel %vm780, %v961, -inf
      %967 = vmax.xlane.f32.xlu0 %v966
      %v968 = vpop.xlane.xlu0 %967
      %v969 = vsel %vm787, %v962, -inf
      %970 = vmax.xlane.f32.xlu0 %v969
      %v971 = vpop.xlane.xlu0 %970
      %v972 = vsub.f32 %v960, %v965
      %v973 = vsub.f32 %v961, %v968
      %v974 = vsub.f32 %v962, %v971
      %v975 = vmul.f32 %v972, 1.442695
      %v976 = vpow.pop %v975
      %v977 = vmul.f32 %v973, 1.442695
      %v978 = vpow.pop %v977
      %v979 = vmul.f32 %v974, 1.442695
      %v980 = vpow.pop %v979
      %v981 = vsel %vm780, %v976, 0.0
      %982 = vadd.xlane.f32.xlu0 %v981
      %v983 = vpop.xlane.xlu0 %982
      %v984 = vsel %vm780, %v978, 0.0
      %985 = vadd.xlane.f32.xlu0 %v984
      %v986 = vpop.xlane.xlu0 %985
      %v987 = vsel %vm787, %v980, 0.0
      %988 = vadd.xlane.f32.xlu0 %v987
      %v989 = vpop.xlane.xlu0 %988
      %v990 = vrcp.pop %v983
      %v991 = vrcp.pop %v986
      %v992 = vrcp.pop %v989
      %v993 = vmul.f32 %v976, %v990
      %v994 = vmul.f32 %v978, %v991
      %v995 = vmul.f32 %v980, %v992
      %v996 = vpack.c.bf16 %v994, %v993
      %v997 = vpack.c.bf16 %v995, %v995
      %1000 = vrot.lane.b32.xlu0 %v817, 64
      %v1001 = vpop.permute.xlu0 %1000
      %1002 = vrot.lane.b32.xlu0 %v818, 64
      %v1003 = vpop.permute.xlu0 %1002
      %v1006 = vsel %vm780, %v996, 0
      %v1009 = vsel %vm780, %v997, 0
      %v1012 = vand.u32 %v1003, %v826
      %1014 = vmatprep.subr.bf16.mxu0 0
      %1015 = vmatpush1.bf16.msra.mxu0 0
      %1016 = vmatprep.subr.bf16.mxu0 0
      %1017 = vmatpush1.bf16.msra.mxu0 0
      %1018 = vmatprep.subr.bf16.mxu0 0
      %1019 = vmatpush1.bf16.msra.mxu0 0
      %1020 = vmatprep.subr.bf16.mxu0 0
      %1021 = vmatpush1.bf16.msra.mxu0 0
      %1022 = vmatprep.subr.bf16.mxu0 0
      %1023 = vmatpush1.bf16.msra.mxu0 0
      %1024 = vmatprep.subr.bf16.mxu0 0
      %1025 = vmatpush1.bf16.msra.mxu0 0
      %1026 = vmatprep.subr.bf16.mxu0 0
      %1027 = vmatpush1.bf16.msra.mxu0 %v1012
      %1028 = vmatprep.subr.bf16.mxu0 0
      %1029 = vmatpush1.bf16.msra.mxu0 %v1001
      %1030 = vmatprep.subr.bf16.mxu0 0
      %1031 = vmatpush2.bf16.msra.mxu0 0
      %1032 = vmatprep.subr.bf16.mxu0 0
      %1033 = vmatpush2.bf16.msra.mxu0 0
      %1034 = vmatprep.subr.bf16.mxu0 0
      %1035 = vmatpush2.bf16.msra.mxu0 0
      %1036 = vmatprep.subr.bf16.mxu0 0
      %1037 = vmatpush2.bf16.msra.mxu0 0
      %1038 = vmatprep.subr.bf16.mxu0 0
      %1039 = vmatpush2.bf16.msra.mxu0 0
      %1040 = vmatprep.subr.bf16.mxu0 0
      %1041 = vmatpush2.bf16.msra.mxu0 0
      %1042 = vmatprep.subr.bf16.mxu0 0
      %1043 = vmatpush2.bf16.msra.mxu0 0
      %1044 = vmatprep.subr.bf16.mxu0 0
      %1045 = vmatpush2.bf16.msra.mxu0 0
      %1046 = vmatprep.mubr.bf16.mxu0 0
      %1047 = vmatmul.mubr.bf16.gmra.mxu0 %v1006
      %v1048 = vpop.f32.mrf.mxu0
      %v1049 = vadd.f32 0.0, %v1048
      %v1050 = vpop.f32.mrf.mxu0
      %v1051 = vpop.f32.mrf.mxu0
      %v1052 = vadd.f32 0.0, %v1051
      %v1053 = vpop.f32.mrf.mxu0
      %1054 = vmatprep.mubr.bf16.mxu0 0
      %1055 = vmatmul.mubr.bf16.gmra.mxu0 %v1009
      %v1056 = vpop.f32.mrf.mxu0
      %v1057 = vadd.f32 0.0, %v1056
      %v1058 = vpop.f32.mrf.mxu0
      %v1059 = vpop.f32.mrf.mxu0
      %v1060 = vpop.f32.mrf.mxu0
      %1061 = vdwg.mxu0
      %v1062 = vpack.c.bf16 %v1052, %v1049
      %v1063 = vpack.c.bf16 %v1057, %v1057
      %v1064 = vld [vmem:[%s4 + $0x20] sm:$0xf]
      %v1065 = vld [vmem:[%s4 + $0x24] sm:$0xf]
      %v1066 = vld [vmem:[%s4 + $0x28] sm:$0xf]
      %v1067 = vld [vmem:[%s4 + $0x2c] sm:$0xf]
      %v1068 = vld [vmem:[%s4 + $0x30] sm:$0xf]
      %v1069 = vld [vmem:[%s4 + $0x34] sm:$0xf]
      %v1070 = vld [vmem:[%s4 + $0x38] sm:$0xf]
      %v1071 = vld [vmem:[%s4 + $0x3c] sm:$0xf]
      %v1080 = vunpack.c.l.b16 %v1064
      %v1081 = vunpack.c.l.b16 %v1065
      %v1082 = vunpack.c.l.b16 %v1066
      %v1083 = vunpack.c.l.b16 %v1067
      %v1084 = vunpack.c.l.b16 %v1068
      %v1085 = vunpack.c.l.b16 %v1069
      %v1086 = vunpack.c.l.b16 %v1070
      %v1087 = vunpack.c.l.b16 %v1071
      %v1088 = vpack.c.b16 %v1081, %v1080
      %v1089 = vpack.c.b16 %v1083, %v1082
      %v1090 = vpack.c.b16 %v1085, %v1084
      %v1091 = vpack.c.b16 %v1087, %v1086
      %v1097 = vsel %vm716, %v1062, 0
      %v1100 = vsel %vm716, %v1063, 0
      %1102 = vmatprep.subr.bf16.mxu0 0
      %1103 = vmatpush1.bf16.msra.mxu0 0
      %1104 = vmatprep.subr.bf16.mxu0 0
      %1105 = vmatpush1.bf16.msra.mxu0 0
      %1106 = vmatprep.subr.bf16.mxu0 0
      %1107 = vmatpush1.bf16.msra.mxu0 0
      %1108 = vmatprep.subr.bf16.mxu0 0
      %1109 = vmatpush1.bf16.msra.mxu0 0
      %1110 = vmatprep.subr.bf16.mxu0 0
      %1111 = vmatpush1.bf16.msra.mxu0 %v1091
      %1112 = vmatprep.subr.bf16.mxu0 0
      %1113 = vmatpush1.bf16.msra.mxu0 %v1090
      %1114 = vmatprep.subr.bf16.mxu0 0
      %1115 = vmatpush1.bf16.msra.mxu0 %v1089
      %1116 = vmatprep.subr.bf16.mxu0 0
      %1117 = vmatpush1.bf16.msra.mxu0 %v1088
      %1118 = vmatprep.subr.bf16.mxu0 0
      %1119 = vmatpush2.bf16.msra.mxu0 0
      %1120 = vmatprep.subr.bf16.mxu0 0
      %1121 = vmatpush2.bf16.msra.mxu0 0
      %1122 = vmatprep.subr.bf16.mxu0 0
      %1123 = vmatpush2.bf16.msra.mxu0 0
      %1124 = vmatprep.subr.bf16.mxu0 0
      %1125 = vmatpush2.bf16.msra.mxu0 0
      %1126 = vmatprep.subr.bf16.mxu0 0
      %1127 = vmatpush2.bf16.msra.mxu0 0
      %1128 = vmatprep.subr.bf16.mxu0 0
      %1129 = vmatpush2.bf16.msra.mxu0 0
      %1130 = vmatprep.subr.bf16.mxu0 0
      %1131 = vmatpush2.bf16.msra.mxu0 0
      %1132 = vmatprep.subr.bf16.mxu0 0
      %1133 = vmatpush2.bf16.msra.mxu0 0
      %1134 = vmatprep.mubr.bf16.mxu0 0
      %1135 = vmatmul.mubr.bf16.gmra.mxu0 %v1097
      %v1136 = vpop.f32.mrf.mxu0
      %v1137 = vadd.f32 0.0, %v1136
      %v1138 = vpop.f32.mrf.mxu0
      %v1139 = vpop.f32.mrf.mxu0
      %v1140 = vadd.f32 0.0, %v1139
      %v1141 = vpop.f32.mrf.mxu0
      %1142 = vmatprep.mubr.bf16.mxu0 0
      %1143 = vmatmul.mubr.bf16.gmra.mxu0 %v1100
      %v1144 = vpop.f32.mrf.mxu0
      %v1145 = vadd.f32 0.0, %v1144
      %v1146 = vpop.f32.mrf.mxu0
      %v1147 = vpop.f32.mrf.mxu0
      %v1148 = vpop.f32.mrf.mxu0
      %1149 = vdwg.mxu0
      %v1158 = vunpack.c.l.b16 %v880
      %v1159 = vunpack.c.l.b16 %v881
      %v1160 = vunpack.c.l.b16 %v882
      %v1161 = vunpack.c.l.b16 %v883
      %v1162 = vunpack.c.l.b16 %v884
      %v1163 = vunpack.c.l.b16 %v885
      %v1164 = vunpack.c.l.b16 %v886
      %v1165 = vunpack.c.l.b16 %v887
      %v1166 = vpack.c.b16 %v1159, %v1158
      %v1167 = vpack.c.b16 %v1161, %v1160
      %v1168 = vpack.c.b16 %v1163, %v1162
      %v1169 = vpack.c.b16 %v1165, %v1164
      %v1175 = vsel %vm716, %v878, 0
      %v1178 = vsel %vm716, %v879, 0
      %1180 = vmatprep.subr.bf16.mxu0 0
      %1181 = vmatpush1.bf16.msra.mxu0 0
      %1182 = vmatprep.subr.bf16.mxu0 0
      %1183 = vmatpush1.bf16.msra.mxu0 0
      %1184 = vmatprep.subr.bf16.mxu0 0
      %1185 = vmatpush1.bf16.msra.mxu0 0
      %1186 = vmatprep.subr.bf16.mxu0 0
      %1187 = vmatpush1.bf16.msra.mxu0 0
      %1188 = vmatprep.subr.bf16.mxu0 0
      %1189 = vmatpush1.bf16.msra.mxu0 %v1169
      %1190 = vmatprep.subr.bf16.mxu0 0
      %1191 = vmatpush1.bf16.msra.mxu0 %v1168
      %1192 = vmatprep.subr.bf16.mxu0 0
      %1193 = vmatpush1.bf16.msra.mxu0 %v1167
      %1194 = vmatprep.subr.bf16.mxu0 0
      %1195 = vmatpush1.bf16.msra.mxu0 %v1166
      %1196 = vmatprep.subr.bf16.mxu0 0
      %1197 = vmatpush2.bf16.msra.mxu0 0
      %1198 = vmatprep.subr.bf16.mxu0 0
      %1199 = vmatpush2.bf16.msra.mxu0 0
      %1200 = vmatprep.subr.bf16.mxu0 0
      %1201 = vmatpush2.bf16.msra.mxu0 0
      %1202 = vmatprep.subr.bf16.mxu0 0
      %1203 = vmatpush2.bf16.msra.mxu0 0
      %1204 = vmatprep.subr.bf16.mxu0 0
      %1205 = vmatpush2.bf16.msra.mxu0 0
      %1206 = vmatprep.subr.bf16.mxu0 0
      %1207 = vmatpush2.bf16.msra.mxu0 0
      %1208 = vmatprep.subr.bf16.mxu0 0
      %1209 = vmatpush2.bf16.msra.mxu0 0
      %1210 = vmatprep.subr.bf16.mxu0 0
      %1211 = vmatpush2.bf16.msra.mxu0 0
      %1212 = vmatprep.mubr.bf16.mxu0 0
      %1213 = vmatmul.mubr.bf16.gmra.mxu0 %v1175
      %v1214 = vpop.f32.mrf.mxu0
      %v1215 = vadd.f32 %v1137, %v1214
      %v1216 = vpop.f32.mrf.mxu0
      %v1217 = vpop.f32.mrf.mxu0
      %v1218 = vadd.f32 %v1140, %v1217
      %v1219 = vpop.f32.mrf.mxu0
      %1220 = vmatprep.mubr.bf16.mxu0 0
      %1221 = vmatmul.mubr.bf16.gmra.mxu0 %v1178
      %v1222 = vpop.f32.mrf.mxu0
      %v1223 = vadd.f32 %v1145, %v1222
      %v1224 = vpop.f32.mrf.mxu0
      %v1225 = vpop.f32.mrf.mxu0
      %v1226 = vpop.f32.mrf.mxu0
      %1227 = vdwg.mxu0
      %v1228 = vadd.f32 %v391, %v1215
      %v1229 = vadd.f32 %v392, %v1218
      %v1230 = vadd.f32 %v393, %v1223
      %1231 = vadd.xlane.f32.xlu0 %v1228
      %v1232 = vpop.xlane.xlu0 %1231
      %1233 = vadd.xlane.f32.xlu0 %v1229
      %v1234 = vpop.xlane.xlu0 %1233
      %v1235 = vsel %vm398, %v1230, 0.0
      %1236 = vadd.xlane.f32.xlu0 %v1235
      %v1237 = vpop.xlane.xlu0 %1236
      %v1238 = vmul.f32 %v1232, %v402
      %v1239 = vmul.f32 %v1234, %v402
      %v1240 = vmul.f32 %v1237, %v402
      %v1241 = vsub.f32 %v1228, %v1238
      %v1242 = vsub.f32 %v1229, %v1239
      %v1243 = vsub.f32 %v1230, %v1240
      %v1244 = vmul.f32 %v1241, %v1241
      %v1245 = vmul.f32 %v1242, %v1242
      %v1246 = vmul.f32 %v1243, %v1243
      %1247 = vadd.xlane.f32.xlu0 %v1244
      %v1248 = vpop.xlane.xlu0 %1247
      %1249 = vadd.xlane.f32.xlu0 %v1245
      %v1250 = vpop.xlane.xlu0 %1249
      %v1251 = vsel %vm398, %v1246, 0.0
      %1252 = vadd.xlane.f32.xlu0 %v1251
      %v1253 = vpop.xlane.xlu0 %1252
      %v1254 = vmul.f32 %v1248, %v402
      %v1255 = vmul.f32 %v1250, %v402
      %v1256 = vmul.f32 %v1253, %v402
      %v1257 = vadd.f32 %v1254, 1e-05
      %v1258 = vadd.f32 %v1255, 1e-05
      %v1259 = vadd.f32 %v1256, 1e-05
      %v1260 = vrsqrt.pop %v1257
      %v1261 = vrsqrt.pop %v1258
      %v1262 = vrsqrt.pop %v1259
      %v1263 = vmul.f32 %v1241, %v1260
      %v1264 = vmul.f32 %v1242, %v1261
      %v1265 = vmul.f32 %v1243, %v1262
      %v1266 = vld [vmem:[%s5] sm:$0x1]
      %v1268 = vlaneseq
      %v1269 = vshrl.u32 %v1268, 7
      %v1270 = vsub.s32 0, %v1269
      %v1271 = vrot.slane %v1266, %v1270
      %v1273 = vmul.f32 %v1263, %v1271
      %v1274 = vmul.f32 %v1264, %v1271
      %v1275 = vmul.f32 %v1265, %v1271
      %v1276 = vld [vmem:[%s6] sm:$0x1]
      %v1278 = vlaneseq
      %v1279 = vshrl.u32 %v1278, 7
      %v1280 = vsub.s32 0, %v1279
      %v1281 = vrot.slane %v1276, %v1280
      %v1283 = vadd.f32 %v1273, %v1281
      %v1284 = vadd.f32 %v1274, %v1281
      %v1285 = vadd.f32 %v1275, %v1281
      %v1286 = vld [vmem:[%s7] sm:$0xff]
      %v1287 = vld [vmem:[%s7 + $0x8] sm:$0xff]
      %v1288 = vld [vmem:[%s7 + $0x10] sm:$0xff]
      %v1289 = vld [vmem:[%s7 + $0x18] sm:$0xff]
      %v1290 = vld [vmem:[%s7 + $0x20] sm:$0xff]
      %v1291 = vld [vmem:[%s7 + $0x28] sm:$0xff]
      %v1292 = vld [vmem:[%s7 + $0x30] sm:$0xff]
      %v1293 = vld [vmem:[%s7 + $0x38] sm:$0xff]
      %v1294 = vld [vmem:[%s7 + $0x40] sm:$0xff]
      %v1295 = vld [vmem:[%s7 + $0x48] sm:$0xff]
      %v1296 = vld [vmem:[%s7 + $0x50] sm:$0xff]
      %v1297 = vld [vmem:[%s7 + $0x58] sm:$0xff]
      %v1298 = vld [vmem:[%s7 + $0x60] sm:$0xff]
      %v1299 = vld [vmem:[%s7 + $0x68] sm:$0xff]
      %v1300 = vld [vmem:[%s7 + $0x70] sm:$0xff]
      %v1301 = vld [vmem:[%s7 + $0x78] sm:$0xff]
      %v1302 = vpack.c.bf16 %v1284, %v1283
      %v1303 = vpack.c.bf16 %v1285, %v1285
      %v1304 = vld [vmem:[%s8] sm:$0x3]
      %v1306 = vlaneseq
      %v1307 = vshrl.u32 %v1306, 7
      %v1308 = vsub.s32 0, %v1307
      %v1309 = vrot.slane %v1304, %v1308
      %v1310 = vlaneseq
      %v1311 = vshrl.u32 %v1310, 7
      %v1312 = vsub.s32 1, %v1311
      %v1313 = vrot.slane %v1304, %v1312
      %v1332 = vunpack.c.l.b16 %v1286
      %v1333 = vunpack.c.h.b16 %v1286
      %v1334 = vunpack.c.l.b16 %v1287
      %v1335 = vunpack.c.h.b16 %v1287
      %v1336 = vunpack.c.l.b16 %v1288
      %v1337 = vunpack.c.h.b16 %v1288
      %v1338 = vunpack.c.l.b16 %v1289
      %v1339 = vunpack.c.h.b16 %v1289
      %v1340 = vunpack.c.l.b16 %v1290
      %v1341 = vunpack.c.h.b16 %v1290
      %v1342 = vunpack.c.l.b16 %v1291
      %v1343 = vunpack.c.h.b16 %v1291
      %v1344 = vunpack.c.l.b16 %v1292
      %v1345 = vunpack.c.h.b16 %v1292
      %v1346 = vunpack.c.l.b16 %v1293
      %v1347 = vunpack.c.h.b16 %v1293
      %v1348 = vunpack.c.l.b16 %v1294
      %v1349 = vunpack.c.h.b16 %v1294
      %v1350 = vunpack.c.l.b16 %v1295
      %v1351 = vunpack.c.h.b16 %v1295
      %v1352 = vunpack.c.l.b16 %v1296
      %v1353 = vunpack.c.h.b16 %v1296
      %v1354 = vunpack.c.l.b16 %v1297
      %v1355 = vunpack.c.h.b16 %v1297
      %v1356 = vunpack.c.l.b16 %v1298
      %v1357 = vunpack.c.h.b16 %v1298
      %v1358 = vunpack.c.l.b16 %v1299
      %v1359 = vunpack.c.h.b16 %v1299
      %v1360 = vunpack.c.l.b16 %v1300
      %v1361 = vunpack.c.h.b16 %v1300
      %v1362 = vunpack.c.l.b16 %v1301
      %v1363 = vunpack.c.h.b16 %v1301
      %v1364 = vpack.c.b16 %v1334, %v1332
      %v1365 = vpack.c.b16 %v1335, %v1333
      %v1366 = vpack.c.b16 %v1338, %v1336
      %v1367 = vpack.c.b16 %v1339, %v1337
      %v1368 = vpack.c.b16 %v1342, %v1340
      %v1369 = vpack.c.b16 %v1343, %v1341
      %v1370 = vpack.c.b16 %v1346, %v1344
      %v1371 = vpack.c.b16 %v1347, %v1345
      %v1372 = vpack.c.b16 %v1350, %v1348
      %v1373 = vpack.c.b16 %v1351, %v1349
      %v1374 = vpack.c.b16 %v1354, %v1352
      %v1375 = vpack.c.b16 %v1355, %v1353
      %v1376 = vpack.c.b16 %v1358, %v1356
      %v1377 = vpack.c.b16 %v1359, %v1357
      %v1378 = vpack.c.b16 %v1362, %v1360
      %v1379 = vpack.c.b16 %v1363, %v1361
      %1396 = vmatprep.subr.bf16.mxu0 %v1379
      %1397 = vmatpush1.bf16.msra.mxu0 %v1378
      %1398 = vmatprep.subr.bf16.mxu0 %v1377
      %1399 = vmatpush1.bf16.msra.mxu0 %v1376
      %1400 = vmatprep.subr.bf16.mxu0 %v1375
      %1401 = vmatpush1.bf16.msra.mxu0 %v1374
      %1402 = vmatprep.subr.bf16.mxu0 %v1373
      %1403 = vmatpush1.bf16.msra.mxu0 %v1372
      %1404 = vmatprep.subr.bf16.mxu0 %v1371
      %1405 = vmatpush1.bf16.msra.mxu0 %v1370
      %1406 = vmatprep.subr.bf16.mxu0 %v1369
      %1407 = vmatpush1.bf16.msra.mxu0 %v1368
      %1408 = vmatprep.subr.bf16.mxu0 %v1367
      %1409 = vmatpush1.bf16.msra.mxu0 %v1366
      %1410 = vmatprep.subr.bf16.mxu0 %v1365
      %1411 = vmatpush1.bf16.msra.mxu0 %v1364
      %1412 = vmatprep.subr.bf16.mxu0 0
      %1413 = vmatpush2.bf16.msra.mxu0 0
      %1414 = vmatprep.subr.bf16.mxu0 0
      %1415 = vmatpush2.bf16.msra.mxu0 0
      %1416 = vmatprep.subr.bf16.mxu0 0
      %1417 = vmatpush2.bf16.msra.mxu0 0
      %1418 = vmatprep.subr.bf16.mxu0 0
      %1419 = vmatpush2.bf16.msra.mxu0 0
      %1420 = vmatprep.subr.bf16.mxu0 0
      %1421 = vmatpush2.bf16.msra.mxu0 0
      %1422 = vmatprep.subr.bf16.mxu0 0
      %1423 = vmatpush2.bf16.msra.mxu0 0
      %1424 = vmatprep.subr.bf16.mxu0 0
      %1425 = vmatpush2.bf16.msra.mxu0 0
      %1426 = vmatprep.subr.bf16.mxu0 0
      %1427 = vmatpush2.bf16.msra.mxu0 0
      %1428 = vmatprep.mubr.bf16.mxu0 0
      %1429 = vmatmul.mubr.bf16.gmra.mxu0 %v1302
      %v1430 = vpop.f32.mrf.mxu0
      %v1431 = vadd.f32 %v1309, %v1430
      %v1432 = vpop.f32.mrf.mxu0
      %v1433 = vadd.f32 %v1313, %v1432
      %v1434 = vpop.f32.mrf.mxu0
      %v1435 = vadd.f32 %v1309, %v1434
      %v1436 = vpop.f32.mrf.mxu0
      %v1437 = vadd.f32 %v1313, %v1436
      %1438 = vmatprep.mubr.bf16.mxu0 0
      %1439 = vmatmul.mubr.bf16.gmra.mxu0 %v1303
      %v1440 = vpop.f32.mrf.mxu0
      %v1441 = vadd.f32 %v1309, %v1440
      %v1442 = vpop.f32.mrf.mxu0
      %v1443 = vadd.f32 %v1313, %v1442
      %v1444 = vpop.f32.mrf.mxu0
      %v1445 = vpop.f32.mrf.mxu0
      %1446 = vdwg.mxu0
      %v1447 = vmul.f32 %v1431, 0.5
      %v1448 = vmul.f32 %v1433, 0.5
      %v1449 = vmul.f32 %v1435, 0.5
      %v1450 = vmul.f32 %v1437, 0.5
      %v1451 = vmul.f32 %v1441, 0.5
      %v1452 = vmul.f32 %v1443, 0.5
      %v1453 = vmul.f32 %v1431, 0.044715
      %v1454 = vmul.f32 %v1433, 0.044715
      %v1455 = vmul.f32 %v1435, 0.044715
      %v1456 = vmul.f32 %v1437, 0.044715
      %v1457 = vmul.f32 %v1441, 0.044715
      %v1458 = vmul.f32 %v1443, 0.044715
      %v1459 = vmul.f32 %v1453, %v1431
      %v1460 = vmul.f32 %v1454, %v1433
      %v1461 = vmul.f32 %v1455, %v1435
      %v1462 = vmul.f32 %v1456, %v1437
      %v1463 = vmul.f32 %v1457, %v1441
      %v1464 = vmul.f32 %v1458, %v1443
      %v1465 = vmul.f32 %v1459, %v1431
      %v1466 = vmul.f32 %v1460, %v1433
      %v1467 = vmul.f32 %v1461, %v1435
      %v1468 = vmul.f32 %v1462, %v1437
      %v1469 = vmul.f32 %v1463, %v1441
      %v1470 = vmul.f32 %v1464, %v1443
      %v1471 = vadd.f32 %v1431, %v1465
      %v1472 = vadd.f32 %v1433, %v1466
      %v1473 = vadd.f32 %v1435, %v1467
      %v1474 = vadd.f32 %v1437, %v1468
      %v1475 = vadd.f32 %v1441, %v1469
      %v1476 = vadd.f32 %v1443, %v1470
      %v1477 = vmul.f32 %v1471, 0.7978846
      %v1478 = vmul.f32 %v1472, 0.7978846
      %v1479 = vmul.f32 %v1473, 0.7978846
      %v1480 = vmul.f32 %v1474, 0.7978846
      %v1481 = vmul.f32 %v1475, 0.7978846
      %v1482 = vmul.f32 %v1476, 0.7978846
      %v1483 = vtanh.pop %v1477
      %v1484 = vtanh.pop %v1478
      %v1485 = vtanh.pop %v1479
      %v1486 = vtanh.pop %v1480
      %v1487 = vtanh.pop %v1481
      %v1488 = vtanh.pop %v1482
      %v1489 = vadd.f32 %v1483, 1.0
      %v1490 = vadd.f32 %v1484, 1.0
      %v1491 = vadd.f32 %v1485, 1.0
      %v1492 = vadd.f32 %v1486, 1.0
      %v1493 = vadd.f32 %v1487, 1.0
      %v1494 = vadd.f32 %v1488, 1.0
      %v1495 = vmul.f32 %v1447, %v1489
      %v1496 = vmul.f32 %v1448, %v1490
      %v1497 = vmul.f32 %v1449, %v1491
      %v1498 = vmul.f32 %v1450, %v1492
      %v1499 = vmul.f32 %v1451, %v1493
      %v1500 = vmul.f32 %v1452, %v1494
      %v1501 = vld [vmem:[%s9] sm:$0xf]
      %v1502 = vld [vmem:[%s9 + $0x4] sm:$0xf]
      %v1503 = vld [vmem:[%s9 + $0x8] sm:$0xf]
      %v1504 = vld [vmem:[%s9 + $0xc] sm:$0xf]
      %v1505 = vld [vmem:[%s9 + $0x10] sm:$0xf]
      %v1506 = vld [vmem:[%s9 + $0x14] sm:$0xf]
      %v1507 = vld [vmem:[%s9 + $0x18] sm:$0xf]
      %v1508 = vld [vmem:[%s9 + $0x1c] sm:$0xf]
      %v1509 = vld [vmem:[%s9 + $0x20] sm:$0xf]
      %v1510 = vld [vmem:[%s9 + $0x24] sm:$0xf]
      %v1511 = vld [vmem:[%s9 + $0x28] sm:$0xf]
      %v1512 = vld [vmem:[%s9 + $0x2c] sm:$0xf]
      %v1513 = vld [vmem:[%s9 + $0x30] sm:$0xf]
      %v1514 = vld [vmem:[%s9 + $0x34] sm:$0xf]
      %v1515 = vld [vmem:[%s9 + $0x38] sm:$0xf]
      %v1516 = vld [vmem:[%s9 + $0x3c] sm:$0xf]
      %v1517 = vld [vmem:[%s9 + $0x40] sm:$0xf]
      %v1518 = vld [vmem:[%s9 + $0x44] sm:$0xf]
      %v1519 = vld [vmem:[%s9 + $0x48] sm:$0xf]
      %v1520 = vld [vmem:[%s9 + $0x4c] sm:$0xf]
      %v1521 = vld [vmem:[%s9 + $0x50] sm:$0xf]
      %v1522 = vld [vmem:[%s9 + $0x54] sm:$0xf]
      %v1523 = vld [vmem:[%s9 + $0x58] sm:$0xf]
      %v1524 = vld [vmem:[%s9 + $0x5c] sm:$0xf]
      %v1525 = vld [vmem:[%s9 + $0x60] sm:$0xf]
      %v1526 = vld [vmem:[%s9 + $0x64] sm:$0xf]
      %v1527 = vld [vmem:[%s9 + $0x68] sm:$0xf]
      %v1528 = vld [vmem:[%s9 + $0x6c] sm:$0xf]
      %v1529 = vld [vmem:[%s9 + $0x70] sm:$0xf]
      %v1530 = vld [vmem:[%s9 + $0x74] sm:$0xf]
      %v1531 = vld [vmem:[%s9 + $0x78] sm:$0xf]
      %v1532 = vld [vmem:[%s9 + $0x7c] sm:$0xf]
      %v1533 = vpack.c.bf16 %v1497, %v1495
      %v1534 = vpack.c.bf16 %v1498, %v1496
      %v1535 = vpack.c.bf16 %v1499, %v1499
      %v1536 = vpack.c.bf16 %v1500, %v1500
      %v1569 = vunpack.c.l.b16 %v1501
      %v1570 = vunpack.c.l.b16 %v1502
      %v1571 = vunpack.c.l.b16 %v1503
      %v1572 = vunpack.c.l.b16 %v1504
      %v1573 = vunpack.c.l.b16 %v1505
      %v1574 = vunpack.c.l.b16 %v1506
      %v1575 = vunpack.c.l.b16 %v1507
      %v1576 = vunpack.c.l.b16 %v1508
      %v1577 = vunpack.c.l.b16 %v1509
      %v1578 = vunpack.c.l.b16 %v1510
      %v1579 = vunpack.c.l.b16 %v1511
      %v1580 = vunpack.c.l.b16 %v1512
      %v1581 = vunpack.c.l.b16 %v1513
      %v1582 = vunpack.c.l.b16 %v1514
      %v1583 = vunpack.c.l.b16 %v1515
      %v1584 = vunpack.c.l.b16 %v1516
      %v1585 = vunpack.c.l.b16 %v1517
      %v1586 = vunpack.c.l.b16 %v1518
      %v1587 = vunpack.c.l.b16 %v1519
      %v1588 = vunpack.c.l.b16 %v1520
      %v1589 = vunpack.c.l.b16 %v1521
      %v1590 = vunpack.c.l.b16 %v1522
      %v1591 = vunpack.c.l.b16 %v1523
      %v1592 = vunpack.c.l.b16 %v1524
      %v1593 = vunpack.c.l.b16 %v1525
      %v1594 = vunpack.c.l.b16 %v1526
      %v1595 = vunpack.c.l.b16 %v1527
      %v1596 = vunpack.c.l.b16 %v1528
      %v1597 = vunpack.c.l.b16 %v1529
      %v1598 = vunpack.c.l.b16 %v1530
      %v1599 = vunpack.c.l.b16 %v1531
      %v1600 = vunpack.c.l.b16 %v1532
      %v1601 = vpack.c.b16 %v1570, %v1569
      %v1602 = vpack.c.b16 %v1572, %v1571
      %v1603 = vpack.c.b16 %v1574, %v1573
      %v1604 = vpack.c.b16 %v1576, %v1575
      %v1605 = vpack.c.b16 %v1578, %v1577
      %v1606 = vpack.c.b16 %v1580, %v1579
      %v1607 = vpack.c.b16 %v1582, %v1581
      %v1608 = vpack.c.b16 %v1584, %v1583
      %v1609 = vpack.c.b16 %v1586, %v1585
      %v1610 = vpack.c.b16 %v1588, %v1587
      %v1611 = vpack.c.b16 %v1590, %v1589
      %v1612 = vpack.c.b16 %v1592, %v1591
      %v1613 = vpack.c.b16 %v1594, %v1593
      %v1614 = vpack.c.b16 %v1596, %v1595
      %v1615 = vpack.c.b16 %v1598, %v1597
      %v1616 = vpack.c.b16 %v1600, %v1599
      %1633 = vmatprep.subr.bf16.mxu0 0
      %1634 = vmatpush1.bf16.msra.mxu0 %v1608
      %1635 = vmatprep.subr.bf16.mxu0 0
      %1636 = vmatpush1.bf16.msra.mxu0 %v1607
      %1637 = vmatprep.subr.bf16.mxu0 0
      %1638 = vmatpush1.bf16.msra.mxu0 %v1606
      %1639 = vmatprep.subr.bf16.mxu0 0
      %1640 = vmatpush1.bf16.msra.mxu0 %v1605
      %1641 = vmatprep.subr.bf16.mxu0 0
      %1642 = vmatpush1.bf16.msra.mxu0 %v1604
      %1643 = vmatprep.subr.bf16.mxu0 0
      %1644 = vmatpush1.bf16.msra.mxu0 %v1603
      %1645 = vmatprep.subr.bf16.mxu0 0
      %1646 = vmatpush1.bf16.msra.mxu0 %v1602
      %1647 = vmatprep.subr.bf16.mxu0 0
      %1648 = vmatpush1.bf16.msra.mxu0 %v1601
      %1649 = vmatprep.subr.bf16.mxu0 0
      %1650 = vmatpush2.bf16.msra.mxu0 %v1616
      %1651 = vmatprep.subr.bf16.mxu0 0
      %1652 = vmatpush2.bf16.msra.mxu0 %v1615
      %1653 = vmatprep.subr.bf16.mxu0 0
      %1654 = vmatpush2.bf16.msra.mxu0 %v1614
      %1655 = vmatprep.subr.bf16.mxu0 0
      %1656 = vmatpush2.bf16.msra.mxu0 %v1613
      %1657 = vmatprep.subr.bf16.mxu0 0
      %1658 = vmatpush2.bf16.msra.mxu0 %v1612
      %1659 = vmatprep.subr.bf16.mxu0 0
      %1660 = vmatpush2.bf16.msra.mxu0 %v1611
      %1661 = vmatprep.subr.bf16.mxu0 0
      %1662 = vmatpush2.bf16.msra.mxu0 %v1610
      %1663 = vmatprep.subr.bf16.mxu0 0
      %1664 = vmatpush2.bf16.msra.mxu0 %v1609
      %1665 = vmatprep.mubr.bf16.mxu0 %v1534
      %1666 = vmatmul.mubr.bf16.gmra.mxu0 %v1533
      %v1667 = vpop.f32.mrf.mxu0
      %v1668 = vadd.f32 0.0, %v1667
      %v1669 = vpop.f32.mrf.mxu0
      %v1670 = vpop.f32.mrf.mxu0
      %v1671 = vadd.f32 0.0, %v1670
      %v1672 = vpop.f32.mrf.mxu0
      %1673 = vmatprep.mubr.bf16.mxu0 %v1536
      %1674 = vmatmul.mubr.bf16.gmra.mxu0 %v1535
      %v1675 = vpop.f32.mrf.mxu0
      %v1676 = vadd.f32 0.0, %v1675
      %v1677 = vpop.f32.mrf.mxu0
      %v1678 = vpop.f32.mrf.mxu0
      %v1679 = vpop.f32.mrf.mxu0
      %1680 = vdwg.mxu0
      %v1681 = vadd.f32 %v1228, %v1668
      %v1682 = vadd.f32 %v1229, %v1671
      %v1683 = vadd.f32 %v1230, %v1676
      %v1684 = vld [vmem:[%s10] sm:$0x1]
      %v1686 = vlaneseq
      %v1687 = vshrl.u32 %v1686, 7
      %v1688 = vsub.s32 0, %v1687
      %v1689 = vrot.slane %v1684, %v1688
      %v1691 = vadd.f32 %v1681, %v1689
      %v1692 = vadd.f32 %v1682, %v1689
      %v1693 = vadd.f32 %v1683, %v1689
      %v1694 = vpack.c.bf16 %v1692, %v1691
      %v1695 = vpack.c.bf16 %v1693, %v1693
      %v1698 = vunpack.c.l.b16 %v1694
      %v1699 = vunpack.c.h.b16 %v1694
      %v1700 = vunpack.c.l.b16 %v1695
      %v1701 = vpack.c.b16 %v1698, %v1698
      %v1702 = vpack.c.b16 %v1699, %v1699
      %v1703 = vpack.c.b16 %v1700, %v1700
      %1707 = vst [vmem:[%s386] sm:$0xf] %v1701
      %1708 = vst [vmem:[%s386 + $0x4] sm:$0xf] %v1702
      %vm1709 = vcmask 1040384
      %vm1710 = vsmask.f32 256
      %vm1711 = vmand %vm1709, %vm1710
      %v1712 = vld [vmem:[%s386 + $0x8] sm:$0x1]
      %v1713 = vsel %vm1711, %v1703, %v1712
      %1714 = vst [vmem:[%s386 + $0x8] sm:$0x1] %v1713
      %p1715 = scmp.lt.s32.totalorder %s22, 1
      %s1716 = scalar_select %p1715, %s22, 1
      %s1717 = smul.addr %s1716, 3
      %s1718 = smul.addr %s1717, 4
      %s1719 = scalar_lea.vmem %s11, %s1718
      // Predicated region
      $region65: #{vit_forward.5} parent=63 // pred_check
        %p1720 = pneg %p276
      $region66: #{vit_forward.5} parent=63 // pred_check_branch
        %1722 = sbr.rel (%p1720) target = $region68
      $region67: #{vit_forward.5} parent=63 // pred_region
        _
      $region68: #{vit_forward.5} parent=63 // pred_fallthru
        _
    $region64: #{vit_forward.5} parent=5 // pred_fallthru
      _
    %p1723 = scmp.le.s32.totalorder 2, %s17
    // Predicated region
    $region69: #{vit_forward.5} parent=5 // pred_check
      %p1724 = pneg %p1723
    $region70: #{vit_forward.5} parent=5 // pred_check_branch
      %1726 = sbr.rel (%p1724) target = $region72
    $region71: #{vit_forward.5} parent=5 // pred_region
      %s1727 = ssub.s32 %s17, 2
      // Predicated region
      $region73: #{vit_forward.5} parent=71 // pred_check
        %p1728 = pneg %p282
      $region74: #{vit_forward.5} parent=71 // pred_check_branch
        %1730 = sbr.rel (%p1728) target = $region76
      $region75: #{vit_forward.5} parent=71 // pred_region
        %p1731 = scmp.lt.s32.totalorder %s23, 1
        %s1732 = scalar_select %p1731, %s23, 1
        %s1733 = smul.addr %s1732, 3
        %s1734 = smul.addr %s1733, 4
        %s1735 = scalar_lea.vmem %s11, %s1734
      $region76: #{vit_forward.5} parent=71 // pred_fallthru
        _
    $region72: #{vit_forward.5} parent=5 // pred_fallthru
      _
  $region6: #{vit_forward.5} parent=0 // loop_footer
    %s21 = sadd.s32 1, %s17
  $region7: #{vit_forward.5} parent=0 // loop_footer_branch
    %16 = sbr.rel target = $region3
  $region8: #{vit_forward.5} parent=0 // loop_exit
    _

</llo_original>
